<compile_context>
chip_gen: v5e
topology: v5e:2x2
jax: 0.10.0
libtpu: 0.0.40
codegen_flags: <defaults>
</compile_context>

<pallas_src>
import math
from functools import partial

import jax
import jax.numpy as jnp
from jax import lax
from jax.experimental import pallas as pl
from jax.experimental.pallas import tpu as pltpu

# --- model config ---
B = 2          # batch (patients)
N_TOK = 8      # tokens per patient
D = 32         # hidden_dim
H = 4          # attention heads
DH = D // H    # head dim (8)
M = 64         # MLP intermediate dim
L = 2          # encoder layers
C = 1          # num_classes
S1 = N_TOK + 1 # sequence length after CLS prepend (9)
SP = 16        # padded per-patient sequence length (power of two >= S1)
EPS_ENC = 1e-12   # HF ViT layer_norm_eps
EPS_HEAD = 1e-5   # torch.nn.LayerNorm default eps (mlp_head)
NEG = -1e9        # finite "-inf" for the additive attention mask

# --- packed parameter + constant slab layout: one (P_ROWS, 128) f32 VMEM input ---
# per-layer section (LROWS rows each):
OFF_LN = 0                 # row 0:  ln1_g | ln1_b | ln2_g | ln2_b
OFF_BVEC = 8               # row 8:  bo | bo2 | bi
OFF_BH = 16                # head h bias [bq|bk|bv] at row 16 + 8*h (8-aligned)
OFF_WQKV = 48              # head-stacked QKV weight  (H*D, 3*DH)
OFF_WO = OFF_WQKV + H * D  # out-proj weight (D, D), head h rows h*DH..(h+1)*DH
OFF_WI = OFF_WO + D        # MLP in weight  (D, M)
OFF_WO2 = OFF_WI + D       # MLP out weight (M, D)
LROWS = OFF_WO2 + M        # rows per encoder layer (304)
# head + precomputed-constant section:
HEAD_BASE = L * LROWS      # 608
OFF_HROW = 0               # hg | hb
OFF_HBIAS = 8              # head bias padded to 128 lanes (lane 0)
OFF_CLS_SEL = 16           # CLS gather matrix (8, rows)
OFF_HW = 24                # head weight padded to (D, 128) (col 0 used)
OFF_AMASK = OFF_HW + D     # additive attention mask (pk, pk)


def p_rows(nb):
    return HEAD_BASE + OFF_AMASK + H * nb * SP


# DEFAULT MXU precision (single bf16 pass): 3-6x fewer MXU pushes than HIGHEST,
# well within the verification tolerance.
_dot = partial(jnp.dot, preferred_element_type=jnp.float32)


def _layer_norm(x, g, b, eps):
    mu = jnp.mean(x, axis=-1, keepdims=True)
    xc = x - mu
    var = jnp.mean(xc * xc, axis=-1, keepdims=True)
    return xc * lax.rsqrt(var + eps) * g + b


def _gelu(x):
    # TODO(synk): HF ViT uses exact erf-GELU; tanh approximation is used here
    # for robust Mosaic lowering (numerically near-identical at these scales).
    c = 0.7978845608028654  # sqrt(2/pi)
    return 0.5 * x * (1.0 + jnp.tanh(c * (x + 0.044715 * x * x * x)))


def make_kernel(nb):
    """Kernel processing `nb` batch elements (patients) per program."""
    rows = nb * SP              # working rows (batch folded into sublanes)
    pk = H * rows               # head-packed attention rows (128 at nb=2)

    def kernel(x_ref, p_ref, out_ref, qkv_ref):
        # CLS prepend + zero padding already done in the wrapper.
        x = x_ref[...]                                               # (rows, D)
        # precomputed additive mask (same head, same patient, key inside real seq)
        attn_mask = p_ref[HEAD_BASE + OFF_AMASK:HEAD_BASE + OFF_AMASK + pk, 0:pk]

        for l in range(L):                                           # static unroll
            base = l * LROWS
            ln1_g = p_ref[base + OFF_LN:base + OFF_LN + 1, 0:D]
            ln1_b = p_ref[base + OFF_LN:base + OFF_LN + 1, D:2 * D]
            ln2_g = p_ref[base + OFF_LN:base + OFF_LN + 1, 2 * D:3 * D]
            ln2_b = p_ref[base + OFF_LN:base + OFF_LN + 1, 3 * D:4 * D]
            bo = p_ref[base + OFF_BVEC:base + OFF_BVEC + 1, 0:D]
            bo2 = p_ref[base + OFF_BVEC:base + OFF_BVEC + 1, D:2 * D]
            bi = p_ref[base + OFF_BVEC:base + OFF_BVEC + 1, 2 * D:2 * D + M]

            # --- self-attention (pre-LN): per-head QKV matmuls into packed scratch ---
            h1 = _layer_norm(x, ln1_g, ln1_b, EPS_ENC)               # (rows, D)
            for hh in range(H):
                w_h = p_ref[base + OFF_WQKV + hh * D:
                            base + OFF_WQKV + (hh + 1) * D, 0:3 * DH]   # (D, 3*DH)
                b_h = p_ref[base + OFF_BH + 8 * hh:
                            base + OFF_BH + 8 * hh + 1, 0:3 * DH]       # (1, 3*DH)
                qkv_ref[hh * rows:(hh + 1) * rows, :] = _dot(h1, w_h) + b_h
            q = qkv_ref[:, 0:DH]          # 1/sqrt(DH) already folded in (host side)
            k = qkv_ref[:, DH:2 * DH]
            v = qkv_ref[:, 2 * DH:3 * DH]
            # one packed (pk, pk) score matmul for all heads & patients
            s = lax.dot_general(q, k, (((1,), (1,)), ((), ())),
                                preferred_element_type=jnp.float32)
            e = jnp.exp(s + attn_mask)            # masked entries: exp(-1e9) -> 0
            a = e * pl.reciprocal(jnp.sum(e, axis=-1, keepdims=True), approx=True)
            ctx = _dot(a, v)                                         # (pk, DH)
            # per-head output projection (sublane-aligned slices, no wasted MXU work)
            attn = bo
            for hh in range(H):
                wo_h = p_ref[base + OFF_WO + hh * DH:
                             base + OFF_WO + (hh + 1) * DH, 0:D]        # (DH, D)
                attn = attn + _dot(ctx[hh * rows:(hh + 1) * rows, :], wo_h)
            x = x + attn                                             # residual 1

            # --- MLP block (pre-LN) ---
            w_i = p_ref[base + OFF_WI:base + OFF_WI + D, 0:M]
            w_o2 = p_ref[base + OFF_WO2:base + OFF_WO2 + M, 0:D]
            h2 = _layer_norm(x, ln2_g, ln2_b, EPS_ENC)
            inter = _gelu(_dot(h2, w_i) + bi)                        # (rows, M)
            x = x + _dot(inter, w_o2) + bo2                          # residual 2

        # --- mlp_head on the CLS tokens, lane-dense (8, 128) output block ---
        hg = p_ref[HEAD_BASE + OFF_HROW:HEAD_BASE + OFF_HROW + 1, 0:D]
        hb = p_ref[HEAD_BASE + OFF_HROW:HEAD_BASE + OFF_HROW + 1, D:2 * D]
        hbias = p_ref[HEAD_BASE + OFF_HBIAS:HEAD_BASE + OFF_HBIAS + 1, :]    # (1, 128)
        cls_sel = p_ref[HEAD_BASE + OFF_CLS_SEL:
                        HEAD_BASE + OFF_CLS_SEL + 8, 0:rows]                 # (8, rows)
        hw = p_ref[HEAD_BASE + OFF_HW:HEAD_BASE + OFF_HW + D, :]             # (D, 128)
        cls = _dot(cls_sel, x)                                       # (8, D)
        cls = _layer_norm(cls, hg, hb, EPS_HEAD)
        out_ref[0] = _dot(cls, hw) + hbias                           # (8, 128)

    return kernel


def _batch_split(bsz):
    """Split across the two v7x TensorCores only when each core still fills a
    128-row packed attention (>= 2 patients per core); otherwise the grid split
    is pure per-step / duplicated-setup overhead at this problem size."""
    try:
        kind = jax.devices()[0].device_kind.lower()
    except Exception:
        return 1
    if "v7" in kind and bsz % 2 == 0 and (bsz // 2) * SP * H >= 128:
        return 2
    return 1


def vit_forward(x_tokens, pbuf, split=1):
    bsz, ntok, d = x_tokens.shape
    nb = bsz // split
    # CLS prepend + zero padding in the wrapper: one cheap XLA op on a 2 KB array.
    x_pad = jnp.zeros((bsz, SP, d), x_tokens.dtype).at[:, 1:1 + ntok, :].set(x_tokens)
    x_flat = x_pad.reshape(bsz * SP, d)
    out3 = pl.pallas_call(
        make_kernel(nb),
        out_shape=jax.ShapeDtypeStruct((split, 8, 128), jnp.float32),
        grid=(split,),
        in_specs=[
            pl.BlockSpec((nb * SP, d), lambda i: (i, 0)),
            pl.BlockSpec((pbuf.shape[0], 128), lambda i: (0, 0)),
        ],
        out_specs=pl.BlockSpec((1, 8, 128), lambda i: (i, 0, 0)),
        scratch_shapes=[pltpu.VMEM((H * nb * SP, 3 * DH), jnp.float32)],
        compiler_params=pltpu.CompilerParams(
            dimension_semantics=("parallel",)),
    )(x_flat, pbuf)
    return out3[:, :nb, :C].reshape(bsz, C)


def pack_params(p, nb=B):
    """One-time host-side packing of all weights AND all constant selection /
    mask matrices into a single (P_ROWS, 128) f32 slab (2 input DMA descriptors
    total; no iota/mask construction inside the kernel). The 1/sqrt(DH) scale is
    folded into wq/bq, and QKV weights are re-laid-out head-major to match the
    head-packed attention computed in the kernel."""
    scale = 1.0 / math.sqrt(DH)
    rows = nb * SP
    pk = H * rows
    buf = jnp.zeros((p_rows(nb), 128), jnp.float32)
    for l in range(L):
        b0 = l * LROWS
        buf = buf.at[b0 + OFF_LN, :].set(
            jnp.concatenate([p["ln1_g"][l], p["ln1_b"][l], p["ln2_g"][l], p["ln2_b"][l]]))
        buf = buf.at[b0 + OFF_BVEC, :].set(
            jnp.concatenate([p["bo"][l], p["bo2"][l], p["bi"][l]]))
        wq = p["wq"][l] * scale
        bq = p["bq"][l] * scale
        wk, bk = p["wk"][l], p["bk"][l]
        wv, bv = p["wv"][l], p["bv"][l]
        for h in range(H):
            sl = slice(h * DH, (h + 1) * DH)
            buf = buf.at[b0 + OFF_BH + 8 * h, 0:3 * DH].set(
                jnp.concatenate([bq[sl], bk[sl], bv[sl]]))
            buf = buf.at[b0 + OFF_WQKV + h * D:b0 + OFF_WQKV + (h + 1) * D, 0:3 * DH].set(
                jnp.concatenate([wq[:, sl], wk[:, sl], wv[:, sl]], axis=1))
        buf = buf.at[b0 + OFF_WO:b0 + OFF_WO + D, 0:D].set(p["wo"][l])
        buf = buf.at[b0 + OFF_WI:b0 + OFF_WI + D, 0:M].set(p["wi"][l])
        buf = buf.at[b0 + OFF_WO2:b0 + OFF_WO2 + M, 0:D].set(p["wo2"][l])
    # mlp_head parameters (head weight / bias padded to 128 lanes for a
    # lane-dense output store)
    buf = buf.at[HEAD_BASE + OFF_HROW, 0:2 * D].set(jnp.concatenate([p["hg"], p["hb"]]))
    buf = buf.at[HEAD_BASE + OFF_HBIAS, 0:C].set(p["hbias"][0])
    buf = buf.at[HEAD_BASE + OFF_HW:HEAD_BASE + OFF_HW + D, 0:C].set(p["hw"])
    # --- precomputed constants (built once here, ride the single param DMA) ---
    ii = jnp.arange(8)[:, None]
    jj = jnp.arange(rows)[None, :]
    cls_sel = ((ii < nb) & (jj == ii * SP)).astype(jnp.float32)          # (8, rows)
    buf = buf.at[HEAD_BASE + OFF_CLS_SEL:HEAD_BASE + OFF_CLS_SEL + 8, 0:rows].set(cls_sel)
    ai = jnp.arange(pk)[:, None]
    aj = jnp.arange(pk)[None, :]
    allowed = ((ai // rows) == (aj // rows)) \
        & (((ai % rows) // SP) == ((aj % rows) // SP)) \
        & ((aj % SP) < S1)
    amask = jnp.where(allowed, 0.0, NEG).astype(jnp.float32)            # (pk, pk)
    buf = buf.at[HEAD_BASE + OFF_AMASK:HEAD_BASE + OFF_AMASK + pk, 0:pk].set(amask)
    return buf


def _softmax_last(s):
    s = s - jnp.max(s, axis=-1, keepdims=True)
    e = jnp.exp(s)
    return e / jnp.sum(e, axis=-1, keepdims=True)


def reference_forward(x_tokens, p):
    """Pure-JAX reference with identical math (sanity check only)."""
    bb = x_tokens.shape[0]
    cls = jnp.zeros((bb, 1, D), x_tokens.dtype)
    x = jnp.concatenate([cls, x_tokens], axis=1)
    for l in range(L):
        h = _layer_norm(x, p["ln1_g"][l], p["ln1_b"][l], EPS_ENC)
        q = (h @ p["wq"][l] + p["bq"][l]).reshape(bb, S1, H, DH)
        k = (h @ p["wk"][l] + p["bk"][l]).reshape(bb, S1, H, DH)
        v = (h @ p["wv"][l] + p["bv"][l]).reshape(bb, S1, H, DH)
        s = jnp.einsum("bqhd,bkhd->bhqk", q, k) / math.sqrt(DH)
        a = _softmax_last(s)
        ctx = jnp.einsum("bhqk,bkhd->bqhd", a, v).reshape(bb, S1, D)
        x = x + (ctx @ p["wo"][l] + p["bo"][l])
        h2 = _layer_norm(x, p["ln2_g"][l], p["ln2_b"][l], EPS_ENC)
        inter = _gelu(h2 @ p["wi"][l] + p["bi"][l])
        x = x + (inter @ p["wo2"][l] + p["bo2"][l])
    cls_tok = x[:, 0]
    cls_tok = _layer_norm(cls_tok, p["hg"], p["hb"], EPS_HEAD)
    return cls_tok @ p["hw"] + p["hbias"]


def init_params(key):
    ks = iter(jax.random.split(key, 32))
    nrm = lambda shape, s: (s * jax.random.normal(next(ks), shape)).astype(jnp.float32)
    return {
        "ln1_g": 1.0 + nrm((L, D), 0.05), "ln1_b": nrm((L, D), 0.02),
        "wq": nrm((L, D, D), 0.02), "bq": nrm((L, D), 0.02),
        "wk": nrm((L, D, D), 0.02), "bk": nrm((L, D), 0.02),
        "wv": nrm((L, D, D), 0.02), "bv": nrm((L, D), 0.02),
        "wo": nrm((L, D, D), 0.02), "bo": nrm((L, D), 0.02),
        "ln2_g": 1.0 + nrm((L, D), 0.05), "ln2_b": nrm((L, D), 0.02),
        "wi": nrm((L, D, M), 0.02), "bi": nrm((L, M), 0.02),
        "wo2": nrm((L, M, D), 0.02), "bo2": nrm((L, D), 0.02),
        "hg": 1.0 + nrm((D,), 0.05), "hb": nrm((D,), 0.02),
        "hw": nrm((D, C), 0.02), "hbias": nrm((1, C), 0.02),
    }


if __name__ == "__main__":
    root = jax.random.PRNGKey(0)
    k_x, k_p = jax.random.split(root)
    x_tokens = jax.random.normal(k_x, (B, N_TOK, D), dtype=jnp.float32)
    params = init_params(k_p)

    split = _batch_split(B)                 # 1 at B=2 on every TPU generation
    pbuf = pack_params(params, B // split)  # one-time host-side weight+constant packing
    fwd = jax.jit(partial(vit_forward, split=split))
    logits = jax.block_until_ready(fwd(x_tokens, pbuf))

    ref = reference_forward(x_tokens, params)
    assert logits.shape == (B, C)
    assert bool(jnp.all(jnp.isfinite(logits)))
    assert bool(jnp.allclose(logits, ref, atol=5e-2, rtol=5e-2))
    print("KERNEL_OK")
</pallas_src>

<mosaic_0001>
module attributes {stable_mosaic.version = 11 : i64} {
  func.func @kernel(%arg0: i32, %arg1: memref<32x32xf32, #tpu.memory_space<vmem>>, %arg2: memref<792x128xf32, #tpu.memory_space<vmem>>, %arg3: memref<1x8x128xf32, #tpu.memory_space<vmem>>, %arg4: memref<128x24xf32, #tpu.memory_space<vmem>>) attributes {dimension_semantics = [#tpu.dimension_semantics<parallel>], iteration_bounds = array<i64: 1>, scalar_prefetch = 0 : i64, scratch_operands = 1 : i64, tpu.core_type = #tpu.core_type<tc>, window_params = [{transform_indices = @transform_0, window_bounds = array<i64: 32, 32>}, {pipeline_mode = #tpu.pipeline_mode<synchronous>, transform_indices = @transform_1, window_bounds = array<i64: 792, 128>}, {transform_indices = @transform_2, window_bounds = array<i64: 1, 8, 128>}]} {
    %c0 = arith.constant 0 : index
    %c0_0 = arith.constant 0 : index
    %0 = vector.load %arg1[%c0, %c0_0] : memref<32x32xf32, #tpu.memory_space<vmem>>, vector<32x32xf32>
    %c664 = arith.constant 664 : index
    %c0_1 = arith.constant 0 : index
    %1 = vector.load %arg2[%c664, %c0_1] : memref<792x128xf32, #tpu.memory_space<vmem>>, vector<128x128xf32>
    %c0_2 = arith.constant 0 : index
    %c0_3 = arith.constant 0 : index
    %2 = vector.load %arg2[%c0_2, %c0_3] : memref<792x128xf32, #tpu.memory_space<vmem>>, vector<1x32xf32>
    %c0_4 = arith.constant 0 : index
    %c32 = arith.constant 32 : index
    %3 = vector.load %arg2[%c0_4, %c32] : memref<792x128xf32, #tpu.memory_space<vmem>>, vector<1x32xf32>
    %c0_5 = arith.constant 0 : index
    %c64 = arith.constant 64 : index
    %4 = vector.load %arg2[%c0_5, %c64] : memref<792x128xf32, #tpu.memory_space<vmem>>, vector<1x32xf32>
    %c0_6 = arith.constant 0 : index
    %c96 = arith.constant 96 : index
    %5 = vector.load %arg2[%c0_6, %c96] : memref<792x128xf32, #tpu.memory_space<vmem>>, vector<1x32xf32>
    %c8 = arith.constant 8 : index
    %c0_7 = arith.constant 0 : index
    %6 = vector.load %arg2[%c8, %c0_7] : memref<792x128xf32, #tpu.memory_space<vmem>>, vector<1x32xf32>
    %c8_8 = arith.constant 8 : index
    %c32_9 = arith.constant 32 : index
    %7 = vector.load %arg2[%c8_8, %c32_9] : memref<792x128xf32, #tpu.memory_space<vmem>>, vector<1x32xf32>
    %c8_10 = arith.constant 8 : index
    %c64_11 = arith.constant 64 : index
    %8 = vector.load %arg2[%c8_10, %c64_11] : memref<792x128xf32, #tpu.memory_space<vmem>>, vector<1x64xf32>
    %cst = arith.constant dense<0.000000e+00> : vector<32xf32>
    %9 = vector.multi_reduction <add>, %0, %cst [1] : vector<32x32xf32> to vector<32xf32>
    %10 = vector.shape_cast %9 : vector<32xf32> to vector<32x1xf32>
    %cst_12 = arith.constant 3.200000e+01 : f32
    %11 = vector.broadcast %cst_12 : f32 to vector<32x1xf32>
    %12 = arith.divf %10, %11 : vector<32x1xf32>
    %13 = vector.broadcast %12 : vector<32x1xf32> to vector<32x32xf32>
    %14 = arith.subf %0, %13 : vector<32x32xf32>
    %15 = arith.mulf %14, %14 : vector<32x32xf32>
    %cst_13 = arith.constant dense<0.000000e+00> : vector<32xf32>
    %16 = vector.multi_reduction <add>, %15, %cst_13 [1] : vector<32x32xf32> to vector<32xf32>
    %17 = vector.shape_cast %16 : vector<32xf32> to vector<32x1xf32>
    %cst_14 = arith.constant 3.200000e+01 : f32
    %18 = vector.broadcast %cst_14 : f32 to vector<32x1xf32>
    %19 = arith.divf %17, %18 : vector<32x1xf32>
    %cst_15 = arith.constant 9.99999996E-13 : f32
    %20 = vector.broadcast %cst_15 : f32 to vector<32x1xf32>
    %21 = arith.addf %19, %20 : vector<32x1xf32>
    %22 = math.rsqrt %21 : vector<32x1xf32>
    %23 = vector.broadcast %22 : vector<32x1xf32> to vector<32x32xf32>
    %24 = arith.mulf %14, %23 : vector<32x32xf32>
    %25 = vector.broadcast %2 : vector<1x32xf32> to vector<32x32xf32>
    %26 = arith.mulf %24, %25 : vector<32x32xf32>
    %27 = vector.broadcast %3 : vector<1x32xf32> to vector<32x32xf32>
    %28 = arith.addf %26, %27 : vector<32x32xf32>
    %c48 = arith.constant 48 : index
    %c0_16 = arith.constant 0 : index
    %29 = vector.load %arg2[%c48, %c0_16] : memref<792x128xf32, #tpu.memory_space<vmem>>, vector<32x24xf32>
    %c16 = arith.constant 16 : index
    %c0_17 = arith.constant 0 : index
    %30 = vector.load %arg2[%c16, %c0_17] : memref<792x128xf32, #tpu.memory_space<vmem>>, vector<1x24xf32>
    %cst_18 = arith.constant dense<0.000000e+00> : vector<32x24xf32>
    %31 = tpu.matmul %28, %29, %cst_18 {dimension_numbers = #tpu.dot_dimension_numbers<[1], [0], [0], [1], [0, 0, 1, 1], [], []>} : vector<32x32xf32>, vector<32x24xf32>, vector<32x24xf32> -> vector<32x24xf32>
    %32 = vector.broadcast %30 : vector<1x24xf32> to vector<32x24xf32>
    %33 = arith.addf %31, %32 : vector<32x24xf32>
    %c0_19 = arith.constant 0 : index
    %c0_20 = arith.constant 0 : index
    %34 = vector.load %arg4[%c0_19, %c0_20] : memref<128x24xf32, #tpu.memory_space<vmem>>, vector<32x24xf32>
    tpu.vector_store %arg4[%c0_19, %c0_20], %33 {strides = array<i32>} : memref<128x24xf32, #tpu.memory_space<vmem>>, vector<32x24xf32>,
    %c80 = arith.constant 80 : index
    %c0_21 = arith.constant 0 : index
    %35 = vector.load %arg2[%c80, %c0_21] : memref<792x128xf32, #tpu.memory_space<vmem>>, vector<32x24xf32>
    %c24 = arith.constant 24 : index
    %c0_22 = arith.constant 0 : index
    %36 = vector.load %arg2[%c24, %c0_22] : memref<792x128xf32, #tpu.memory_space<vmem>>, vector<1x24xf32>
    %cst_23 = arith.constant dense<0.000000e+00> : vector<32x24xf32>
    %37 = tpu.matmul %28, %35, %cst_23 {dimension_numbers = #tpu.dot_dimension_numbers<[1], [0], [0], [1], [0, 0, 1, 1], [], []>} : vector<32x32xf32>, vector<32x24xf32>, vector<32x24xf32> -> vector<32x24xf32>
    %38 = vector.broadcast %36 : vector<1x24xf32> to vector<32x24xf32>
    %39 = arith.addf %37, %38 : vector<32x24xf32>
    %c32_24 = arith.constant 32 : index
    %c0_25 = arith.constant 0 : index
    %40 = vector.load %arg4[%c32_24, %c0_25] : memref<128x24xf32, #tpu.memory_space<vmem>>, vector<32x24xf32>
    tpu.vector_store %arg4[%c32_24, %c0_25], %39 {strides = array<i32>} : memref<128x24xf32, #tpu.memory_space<vmem>>, vector<32x24xf32>,
    %c112 = arith.constant 112 : index
    %c0_26 = arith.constant 0 : index
    %41 = vector.load %arg2[%c112, %c0_26] : memref<792x128xf32, #tpu.memory_space<vmem>>, vector<32x24xf32>
    %c32_27 = arith.constant 32 : index
    %c0_28 = arith.constant 0 : index
    %42 = vector.load %arg2[%c32_27, %c0_28] : memref<792x128xf32, #tpu.memory_space<vmem>>, vector<1x24xf32>
    %cst_29 = arith.constant dense<0.000000e+00> : vector<32x24xf32>
    %43 = tpu.matmul %28, %41, %cst_29 {dimension_numbers = #tpu.dot_dimension_numbers<[1], [0], [0], [1], [0, 0, 1, 1], [], []>} : vector<32x32xf32>, vector<32x24xf32>, vector<32x24xf32> -> vector<32x24xf32>
    %44 = vector.broadcast %42 : vector<1x24xf32> to vector<32x24xf32>
    %45 = arith.addf %43, %44 : vector<32x24xf32>
    %c64_30 = arith.constant 64 : index
    %c0_31 = arith.constant 0 : index
    %46 = vector.load %arg4[%c64_30, %c0_31] : memref<128x24xf32, #tpu.memory_space<vmem>>, vector<32x24xf32>
    tpu.vector_store %arg4[%c64_30, %c0_31], %45 {strides = array<i32>} : memref<128x24xf32, #tpu.memory_space<vmem>>, vector<32x24xf32>,
    %c144 = arith.constant 144 : index
    %c0_32 = arith.constant 0 : index
    %47 = vector.load %arg2[%c144, %c0_32] : memref<792x128xf32, #tpu.memory_space<vmem>>, vector<32x24xf32>
    %c40 = arith.constant 40 : index
    %c0_33 = arith.constant 0 : index
    %48 = vector.load %arg2[%c40, %c0_33] : memref<792x128xf32, #tpu.memory_space<vmem>>, vector<1x24xf32>
    %cst_34 = arith.constant dense<0.000000e+00> : vector<32x24xf32>
    %49 = tpu.matmul %28, %47, %cst_34 {dimension_numbers = #tpu.dot_dimension_numbers<[1], [0], [0], [1], [0, 0, 1, 1], [], []>} : vector<32x32xf32>, vector<32x24xf32>, vector<32x24xf32> -> vector<32x24xf32>
    %50 = vector.broadcast %48 : vector<1x24xf32> to vector<32x24xf32>
    %51 = arith.addf %49, %50 : vector<32x24xf32>
    %c96_35 = arith.constant 96 : index
    %c0_36 = arith.constant 0 : index
    %52 = vector.load %arg4[%c96_35, %c0_36] : memref<128x24xf32, #tpu.memory_space<vmem>>, vector<32x24xf32>
    tpu.vector_store %arg4[%c96_35, %c0_36], %51 {strides = array<i32>} : memref<128x24xf32, #tpu.memory_space<vmem>>, vector<32x24xf32>,
    %c0_37 = arith.constant 0 : index
    %c0_38 = arith.constant 0 : index
    %53 = vector.load %arg4[%c0_37, %c0_38] : memref<128x24xf32, #tpu.memory_space<vmem>>, vector<128x8xf32>
    %c0_39 = arith.constant 0 : index
    %c8_40 = arith.constant 8 : index
    %54 = vector.load %arg4[%c0_39, %c8_40] : memref<128x24xf32, #tpu.memory_space<vmem>>, vector<128x8xf32>
    %c0_41 = arith.constant 0 : index
    %c16_42 = arith.constant 16 : index
    %55 = vector.load %arg4[%c0_41, %c16_42] : memref<128x24xf32, #tpu.memory_space<vmem>>, vector<128x8xf32>
    %cst_43 = arith.constant dense<0.000000e+00> : vector<128x128xf32>
    %56 = tpu.matmul %53, %54, %cst_43 {dimension_numbers = #tpu.dot_dimension_numbers<[1], [1], [0], [0], [0, 0, 1, 0], [], []>} : vector<128x8xf32>, vector<128x8xf32>, vector<128x128xf32> -> vector<128x128xf32>
    %57 = arith.addf %56, %1 : vector<128x128xf32>
    %58 = math.exp %57 : vector<128x128xf32>
    %cst_44 = arith.constant dense<0.000000e+00> : vector<128xf32>
    %59 = vector.multi_reduction <add>, %58, %cst_44 [1] : vector<128x128xf32> to vector<128xf32>
    %60 = vector.shape_cast %59 : vector<128xf32> to vector<128x1xf32>
    %61 = tpu.reciprocal %60 {approx = true} : vector<128x1xf32> -> vector<128x1xf32>
    %62 = vector.broadcast %61 : vector<128x1xf32> to vector<128x128xf32>
    %63 = arith.mulf %58, %62 : vector<128x128xf32>
    %cst_45 = arith.constant dense<0.000000e+00> : vector<128x8xf32>
    %64 = tpu.matmul %63, %55, %cst_45 {dimension_numbers = #tpu.dot_dimension_numbers<[1], [0], [0], [1], [0, 0, 1, 1], [], []>} : vector<128x128xf32>, vector<128x8xf32>, vector<128x8xf32> -> vector<128x8xf32>
    %c176 = arith.constant 176 : index
    %c0_46 = arith.constant 0 : index
    %65 = vector.load %arg2[%c176, %c0_46] : memref<792x128xf32, #tpu.memory_space<vmem>>, vector<8x32xf32>
    %66 = vector.extract_strided_slice %64 {offsets = [0, 0], sizes = [32, 8], strides = [1, 1]} : vector<128x8xf32> to vector<32x8xf32>
    %cst_47 = arith.constant dense<0.000000e+00> : vector<32x32xf32>
    %67 = tpu.matmul %66, %65, %cst_47 {dimension_numbers = #tpu.dot_dimension_numbers<[1], [0], [0], [1], [0, 0, 1, 1], [], []>} : vector<32x8xf32>, vector<8x32xf32>, vector<32x32xf32> -> vector<32x32xf32>
    %68 = vector.broadcast %6 : vector<1x32xf32> to vector<32x32xf32>
    %69 = arith.addf %68, %67 : vector<32x32xf32>
    %c184 = arith.constant 184 : index
    %c0_48 = arith.constant 0 : index
    %70 = vector.load %arg2[%c184, %c0_48] : memref<792x128xf32, #tpu.memory_space<vmem>>, vector<8x32xf32>
    %71 = vector.extract_strided_slice %64 {offsets = [32, 0], sizes = [32, 8], strides = [1, 1]} : vector<128x8xf32> to vector<32x8xf32>
    %cst_49 = arith.constant dense<0.000000e+00> : vector<32x32xf32>
    %72 = tpu.matmul %71, %70, %cst_49 {dimension_numbers = #tpu.dot_dimension_numbers<[1], [0], [0], [1], [0, 0, 1, 1], [], []>} : vector<32x8xf32>, vector<8x32xf32>, vector<32x32xf32> -> vector<32x32xf32>
    %73 = arith.addf %69, %72 : vector<32x32xf32>
    %c192 = arith.constant 192 : index
    %c0_50 = arith.constant 0 : index
    %74 = vector.load %arg2[%c192, %c0_50] : memref<792x128xf32, #tpu.memory_space<vmem>>, vector<8x32xf32>
    %75 = vector.extract_strided_slice %64 {offsets = [64, 0], sizes = [32, 8], strides = [1, 1]} : vector<128x8xf32> to vector<32x8xf32>
    %cst_51 = arith.constant dense<0.000000e+00> : vector<32x32xf32>
    %76 = tpu.matmul %75, %74, %cst_51 {dimension_numbers = #tpu.dot_dimension_numbers<[1], [0], [0], [1], [0, 0, 1, 1], [], []>} : vector<32x8xf32>, vector<8x32xf32>, vector<32x32xf32> -> vector<32x32xf32>
    %77 = arith.addf %73, %76 : vector<32x32xf32>
    %c200 = arith.constant 200 : index
    %c0_52 = arith.constant 0 : index
    %78 = vector.load %arg2[%c200, %c0_52] : memref<792x128xf32, #tpu.memory_space<vmem>>, vector<8x32xf32>
    %79 = vector.extract_strided_slice %64 {offsets = [96, 0], sizes = [32, 8], strides = [1, 1]} : vector<128x8xf32> to vector<32x8xf32>
    %cst_53 = arith.constant dense<0.000000e+00> : vector<32x32xf32>
    %80 = tpu.matmul %79, %78, %cst_53 {dimension_numbers = #tpu.dot_dimension_numbers<[1], [0], [0], [1], [0, 0, 1, 1], [], []>} : vector<32x8xf32>, vector<8x32xf32>, vector<32x32xf32> -> vector<32x32xf32>
    %81 = arith.addf %77, %80 : vector<32x32xf32>
    %82 = arith.addf %0, %81 : vector<32x32xf32>
    %c208 = arith.constant 208 : index
    %c0_54 = arith.constant 0 : index
    %83 = vector.load %arg2[%c208, %c0_54] : memref<792x128xf32, #tpu.memory_space<vmem>>, vector<32x64xf32>
    %c240 = arith.constant 240 : index
    %c0_55 = arith.constant 0 : index
    %84 = vector.load %arg2[%c240, %c0_55] : memref<792x128xf32, #tpu.memory_space<vmem>>, vector<64x32xf32>
    %cst_56 = arith.constant dense<0.000000e+00> : vector<32xf32>
    %85 = vector.multi_reduction <add>, %82, %cst_56 [1] : vector<32x32xf32> to vector<32xf32>
    %86 = vector.shape_cast %85 : vector<32xf32> to vector<32x1xf32>
    %cst_57 = arith.constant 3.200000e+01 : f32
    %87 = vector.broadcast %cst_57 : f32 to vector<32x1xf32>
    %88 = arith.divf %86, %87 : vector<32x1xf32>
    %89 = vector.broadcast %88 : vector<32x1xf32> to vector<32x32xf32>
    %90 = arith.subf %82, %89 : vector<32x32xf32>
    %91 = arith.mulf %90, %90 : vector<32x32xf32>
    %cst_58 = arith.constant dense<0.000000e+00> : vector<32xf32>
    %92 = vector.multi_reduction <add>, %91, %cst_58 [1] : vector<32x32xf32> to vector<32xf32>
    %93 = vector.shape_cast %92 : vector<32xf32> to vector<32x1xf32>
    %cst_59 = arith.constant 3.200000e+01 : f32
    %94 = vector.broadcast %cst_59 : f32 to vector<32x1xf32>
    %95 = arith.divf %93, %94 : vector<32x1xf32>
    %cst_60 = arith.constant 9.99999996E-13 : f32
    %96 = vector.broadcast %cst_60 : f32 to vector<32x1xf32>
    %97 = arith.addf %95, %96 : vector<32x1xf32>
    %98 = math.rsqrt %97 : vector<32x1xf32>
    %99 = vector.broadcast %98 : vector<32x1xf32> to vector<32x32xf32>
    %100 = arith.mulf %90, %99 : vector<32x32xf32>
    %101 = vector.broadcast %4 : vector<1x32xf32> to vector<32x32xf32>
    %102 = arith.mulf %100, %101 : vector<32x32xf32>
    %103 = vector.broadcast %5 : vector<1x32xf32> to vector<32x32xf32>
    %104 = arith.addf %102, %103 : vector<32x32xf32>
    %cst_61 = arith.constant dense<0.000000e+00> : vector<32x64xf32>
    %105 = tpu.matmul %104, %83, %cst_61 {dimension_numbers = #tpu.dot_dimension_numbers<[1], [0], [0], [1], [0, 0, 1, 1], [], []>} : vector<32x32xf32>, vector<32x64xf32>, vector<32x64xf32> -> vector<32x64xf32>
    %106 = vector.broadcast %8 : vector<1x64xf32> to vector<32x64xf32>
    %107 = arith.addf %105, %106 : vector<32x64xf32>
    %cst_62 = arith.constant 5.000000e-01 : f32
    %108 = vector.broadcast %cst_62 : f32 to vector<32x64xf32>
    %109 = arith.mulf %108, %107 : vector<32x64xf32>
    %cst_63 = arith.constant 4.471500e-02 : f32
    %110 = vector.broadcast %cst_63 : f32 to vector<32x64xf32>
    %111 = arith.mulf %110, %107 : vector<32x64xf32>
    %112 = arith.mulf %111, %107 : vector<32x64xf32>
    %113 = arith.mulf %112, %107 : vector<32x64xf32>
    %114 = arith.addf %107, %113 : vector<32x64xf32>
    %cst_64 = arith.constant 0.797884583 : f32
    %115 = vector.broadcast %cst_64 : f32 to vector<32x64xf32>
    %116 = arith.mulf %115, %114 : vector<32x64xf32>
    %117 = math.tanh %116 : vector<32x64xf32>
    %cst_65 = arith.constant 1.000000e+00 : f32
    %118 = vector.broadcast %cst_65 : f32 to vector<32x64xf32>
    %119 = arith.addf %118, %117 : vector<32x64xf32>
    %120 = arith.mulf %109, %119 : vector<32x64xf32>
    %cst_66 = arith.constant dense<0.000000e+00> : vector<32x32xf32>
    %121 = tpu.matmul %120, %84, %cst_66 {dimension_numbers = #tpu.dot_dimension_numbers<[1], [0], [0], [1], [0, 0, 1, 1], [], []>} : vector<32x64xf32>, vector<64x32xf32>, vector<32x32xf32> -> vector<32x32xf32>
    %122 = arith.addf %82, %121 : vector<32x32xf32>
    %123 = vector.broadcast %7 : vector<1x32xf32> to vector<32x32xf32>
    %124 = arith.addf %122, %123 : vector<32x32xf32>
    %c304 = arith.constant 304 : index
    %c0_67 = arith.constant 0 : index
    %125 = vector.load %arg2[%c304, %c0_67] : memref<792x128xf32, #tpu.memory_space<vmem>>, vector<1x32xf32>
    %c304_68 = arith.constant 304 : index
    %c32_69 = arith.constant 32 : index
    %126 = vector.load %arg2[%c304_68, %c32_69] : memref<792x128xf32, #tpu.memory_space<vmem>>, vector<1x32xf32>
    %c304_70 = arith.constant 304 : index
    %c64_71 = arith.constant 64 : index
    %127 = vector.load %arg2[%c304_70, %c64_71] : memref<792x128xf32, #tpu.memory_space<vmem>>, vector<1x32xf32>
    %c304_72 = arith.constant 304 : index
    %c96_73 = arith.constant 96 : index
    %128 = vector.load %arg2[%c304_72, %c96_73] : memref<792x128xf32, #tpu.memory_space<vmem>>, vector<1x32xf32>
    %c312 = arith.constant 312 : index
    %c0_74 = arith.constant 0 : index
    %129 = vector.load %arg2[%c312, %c0_74] : memref<792x128xf32, #tpu.memory_space<vmem>>, vector<1x32xf32>
    %c312_75 = arith.constant 312 : index
    %c32_76 = arith.constant 32 : index
    %130 = vector.load %arg2[%c312_75, %c32_76] : memref<792x128xf32, #tpu.memory_space<vmem>>, vector<1x32xf32>
    %c312_77 = arith.constant 312 : index
    %c64_78 = arith.constant 64 : index
    %131 = vector.load %arg2[%c312_77, %c64_78] : memref<792x128xf32, #tpu.memory_space<vmem>>, vector<1x64xf32>
    %cst_79 = arith.constant dense<0.000000e+00> : vector<32xf32>
    %132 = vector.multi_reduction <add>, %124, %cst_79 [1] : vector<32x32xf32> to vector<32xf32>
    %133 = vector.shape_cast %132 : vector<32xf32> to vector<32x1xf32>
    %cst_80 = arith.constant 3.200000e+01 : f32
    %134 = vector.broadcast %cst_80 : f32 to vector<32x1xf32>
    %135 = arith.divf %133, %134 : vector<32x1xf32>
    %136 = vector.broadcast %135 : vector<32x1xf32> to vector<32x32xf32>
    %137 = arith.subf %124, %136 : vector<32x32xf32>
    %138 = arith.mulf %137, %137 : vector<32x32xf32>
    %cst_81 = arith.constant dense<0.000000e+00> : vector<32xf32>
    %139 = vector.multi_reduction <add>, %138, %cst_81 [1] : vector<32x32xf32> to vector<32xf32>
    %140 = vector.shape_cast %139 : vector<32xf32> to vector<32x1xf32>
    %cst_82 = arith.constant 3.200000e+01 : f32
    %141 = vector.broadcast %cst_82 : f32 to vector<32x1xf32>
    %142 = arith.divf %140, %141 : vector<32x1xf32>
    %cst_83 = arith.constant 9.99999996E-13 : f32
    %143 = vector.broadcast %cst_83 : f32 to vector<32x1xf32>
    %144 = arith.addf %142, %143 : vector<32x1xf32>
    %145 = math.rsqrt %144 : vector<32x1xf32>
    %146 = vector.broadcast %145 : vector<32x1xf32> to vector<32x32xf32>
    %147 = arith.mulf %137, %146 : vector<32x32xf32>
    %148 = vector.broadcast %125 : vector<1x32xf32> to vector<32x32xf32>
    %149 = arith.mulf %147, %148 : vector<32x32xf32>
    %150 = vector.broadcast %126 : vector<1x32xf32> to vector<32x32xf32>
    %151 = arith.addf %149, %150 : vector<32x32xf32>
    %c352 = arith.constant 352 : index
    %c0_84 = arith.constant 0 : index
    %152 = vector.load %arg2[%c352, %c0_84] : memref<792x128xf32, #tpu.memory_space<vmem>>, vector<32x24xf32>
    %c320 = arith.constant 320 : index
    %c0_85 = arith.constant 0 : index
    %153 = vector.load %arg2[%c320, %c0_85] : memref<792x128xf32, #tpu.memory_space<vmem>>, vector<1x24xf32>
    %cst_86 = arith.constant dense<0.000000e+00> : vector<32x24xf32>
    %154 = tpu.matmul %151, %152, %cst_86 {dimension_numbers = #tpu.dot_dimension_numbers<[1], [0], [0], [1], [0, 0, 1, 1], [], []>} : vector<32x32xf32>, vector<32x24xf32>, vector<32x24xf32> -> vector<32x24xf32>
    %155 = vector.broadcast %153 : vector<1x24xf32> to vector<32x24xf32>
    %156 = arith.addf %154, %155 : vector<32x24xf32>
    %c0_87 = arith.constant 0 : index
    %c0_88 = arith.constant 0 : index
    %157 = vector.load %arg4[%c0_87, %c0_88] : memref<128x24xf32, #tpu.memory_space<vmem>>, vector<32x24xf32>
    tpu.vector_store %arg4[%c0_87, %c0_88], %156 {strides = array<i32>} : memref<128x24xf32, #tpu.memory_space<vmem>>, vector<32x24xf32>,
    %c384 = arith.constant 384 : index
    %c0_89 = arith.constant 0 : index
    %158 = vector.load %arg2[%c384, %c0_89] : memref<792x128xf32, #tpu.memory_space<vmem>>, vector<32x24xf32>
    %c328 = arith.constant 328 : index
    %c0_90 = arith.constant 0 : index
    %159 = vector.load %arg2[%c328, %c0_90] : memref<792x128xf32, #tpu.memory_space<vmem>>, vector<1x24xf32>
    %cst_91 = arith.constant dense<0.000000e+00> : vector<32x24xf32>
    %160 = tpu.matmul %151, %158, %cst_91 {dimension_numbers = #tpu.dot_dimension_numbers<[1], [0], [0], [1], [0, 0, 1, 1], [], []>} : vector<32x32xf32>, vector<32x24xf32>, vector<32x24xf32> -> vector<32x24xf32>
    %161 = vector.broadcast %159 : vector<1x24xf32> to vector<32x24xf32>
    %162 = arith.addf %160, %161 : vector<32x24xf32>
    %c32_92 = arith.constant 32 : index
    %c0_93 = arith.constant 0 : index
    %163 = vector.load %arg4[%c32_92, %c0_93] : memref<128x24xf32, #tpu.memory_space<vmem>>, vector<32x24xf32>
    tpu.vector_store %arg4[%c32_92, %c0_93], %162 {strides = array<i32>} : memref<128x24xf32, #tpu.memory_space<vmem>>, vector<32x24xf32>,
    %c416 = arith.constant 416 : index
    %c0_94 = arith.constant 0 : index
    %164 = vector.load %arg2[%c416, %c0_94] : memref<792x128xf32, #tpu.memory_space<vmem>>, vector<32x24xf32>
    %c336 = arith.constant 336 : index
    %c0_95 = arith.constant 0 : index
    %165 = vector.load %arg2[%c336, %c0_95] : memref<792x128xf32, #tpu.memory_space<vmem>>, vector<1x24xf32>
    %cst_96 = arith.constant dense<0.000000e+00> : vector<32x24xf32>
    %166 = tpu.matmul %151, %164, %cst_96 {dimension_numbers = #tpu.dot_dimension_numbers<[1], [0], [0], [1], [0, 0, 1, 1], [], []>} : vector<32x32xf32>, vector<32x24xf32>, vector<32x24xf32> -> vector<32x24xf32>
    %167 = vector.broadcast %165 : vector<1x24xf32> to vector<32x24xf32>
    %168 = arith.addf %166, %167 : vector<32x24xf32>
    %c64_97 = arith.constant 64 : index
    %c0_98 = arith.constant 0 : index
    %169 = vector.load %arg4[%c64_97, %c0_98] : memref<128x24xf32, #tpu.memory_space<vmem>>, vector<32x24xf32>
    tpu.vector_store %arg4[%c64_97, %c0_98], %168 {strides = array<i32>} : memref<128x24xf32, #tpu.memory_space<vmem>>, vector<32x24xf32>,
    %c448 = arith.constant 448 : index
    %c0_99 = arith.constant 0 : index
    %170 = vector.load %arg2[%c448, %c0_99] : memref<792x128xf32, #tpu.memory_space<vmem>>, vector<32x24xf32>
    %c344 = arith.constant 344 : index
    %c0_100 = arith.constant 0 : index
    %171 = vector.load %arg2[%c344, %c0_100] : memref<792x128xf32, #tpu.memory_space<vmem>>, vector<1x24xf32>
    %cst_101 = arith.constant dense<0.000000e+00> : vector<32x24xf32>
    %172 = tpu.matmul %151, %170, %cst_101 {dimension_numbers = #tpu.dot_dimension_numbers<[1], [0], [0], [1], [0, 0, 1, 1], [], []>} : vector<32x32xf32>, vector<32x24xf32>, vector<32x24xf32> -> vector<32x24xf32>
    %173 = vector.broadcast %171 : vector<1x24xf32> to vector<32x24xf32>
    %174 = arith.addf %172, %173 : vector<32x24xf32>
    %c96_102 = arith.constant 96 : index
    %c0_103 = arith.constant 0 : index
    %175 = vector.load %arg4[%c96_102, %c0_103] : memref<128x24xf32, #tpu.memory_space<vmem>>, vector<32x24xf32>
    tpu.vector_store %arg4[%c96_102, %c0_103], %174 {strides = array<i32>} : memref<128x24xf32, #tpu.memory_space<vmem>>, vector<32x24xf32>,
    %c0_104 = arith.constant 0 : index
    %c0_105 = arith.constant 0 : index
    %176 = vector.load %arg4[%c0_104, %c0_105] : memref<128x24xf32, #tpu.memory_space<vmem>>, vector<128x8xf32>
    %c0_106 = arith.constant 0 : index
    %c8_107 = arith.constant 8 : index
    %177 = vector.load %arg4[%c0_106, %c8_107] : memref<128x24xf32, #tpu.memory_space<vmem>>, vector<128x8xf32>
    %c0_108 = arith.constant 0 : index
    %c16_109 = arith.constant 16 : index
    %178 = vector.load %arg4[%c0_108, %c16_109] : memref<128x24xf32, #tpu.memory_space<vmem>>, vector<128x8xf32>
    %cst_110 = arith.constant dense<0.000000e+00> : vector<128x128xf32>
    %179 = tpu.matmul %176, %177, %cst_110 {dimension_numbers = #tpu.dot_dimension_numbers<[1], [1], [0], [0], [0, 0, 1, 0], [], []>} : vector<128x8xf32>, vector<128x8xf32>, vector<128x128xf32> -> vector<128x128xf32>
    %180 = arith.addf %179, %1 : vector<128x128xf32>
    %181 = math.exp %180 : vector<128x128xf32>
    %cst_111 = arith.constant dense<0.000000e+00> : vector<128xf32>
    %182 = vector.multi_reduction <add>, %181, %cst_111 [1] : vector<128x128xf32> to vector<128xf32>
    %183 = vector.shape_cast %182 : vector<128xf32> to vector<128x1xf32>
    %184 = tpu.reciprocal %183 {approx = true} : vector<128x1xf32> -> vector<128x1xf32>
    %185 = vector.broadcast %184 : vector<128x1xf32> to vector<128x128xf32>
    %186 = arith.mulf %181, %185 : vector<128x128xf32>
    %cst_112 = arith.constant dense<0.000000e+00> : vector<128x8xf32>
    %187 = tpu.matmul %186, %178, %cst_112 {dimension_numbers = #tpu.dot_dimension_numbers<[1], [0], [0], [1], [0, 0, 1, 1], [], []>} : vector<128x128xf32>, vector<128x8xf32>, vector<128x8xf32> -> vector<128x8xf32>
    %c480 = arith.constant 480 : index
    %c0_113 = arith.constant 0 : index
    %188 = vector.load %arg2[%c480, %c0_113] : memref<792x128xf32, #tpu.memory_space<vmem>>, vector<8x32xf32>
    %189 = vector.extract_strided_slice %187 {offsets = [0, 0], sizes = [32, 8], strides = [1, 1]} : vector<128x8xf32> to vector<32x8xf32>
    %cst_114 = arith.constant dense<0.000000e+00> : vector<32x32xf32>
    %190 = tpu.matmul %189, %188, %cst_114 {dimension_numbers = #tpu.dot_dimension_numbers<[1], [0], [0], [1], [0, 0, 1, 1], [], []>} : vector<32x8xf32>, vector<8x32xf32>, vector<32x32xf32> -> vector<32x32xf32>
    %191 = vector.broadcast %129 : vector<1x32xf32> to vector<32x32xf32>
    %192 = arith.addf %191, %190 : vector<32x32xf32>
    %c488 = arith.constant 488 : index
    %c0_115 = arith.constant 0 : index
    %193 = vector.load %arg2[%c488, %c0_115] : memref<792x128xf32, #tpu.memory_space<vmem>>, vector<8x32xf32>
    %194 = vector.extract_strided_slice %187 {offsets = [32, 0], sizes = [32, 8], strides = [1, 1]} : vector<128x8xf32> to vector<32x8xf32>
    %cst_116 = arith.constant dense<0.000000e+00> : vector<32x32xf32>
    %195 = tpu.matmul %194, %193, %cst_116 {dimension_numbers = #tpu.dot_dimension_numbers<[1], [0], [0], [1], [0, 0, 1, 1], [], []>} : vector<32x8xf32>, vector<8x32xf32>, vector<32x32xf32> -> vector<32x32xf32>
    %196 = arith.addf %192, %195 : vector<32x32xf32>
    %c496 = arith.constant 496 : index
    %c0_117 = arith.constant 0 : index
    %197 = vector.load %arg2[%c496, %c0_117] : memref<792x128xf32, #tpu.memory_space<vmem>>, vector<8x32xf32>
    %198 = vector.extract_strided_slice %187 {offsets = [64, 0], sizes = [32, 8], strides = [1, 1]} : vector<128x8xf32> to vector<32x8xf32>
    %cst_118 = arith.constant dense<0.000000e+00> : vector<32x32xf32>
    %199 = tpu.matmul %198, %197, %cst_118 {dimension_numbers = #tpu.dot_dimension_numbers<[1], [0], [0], [1], [0, 0, 1, 1], [], []>} : vector<32x8xf32>, vector<8x32xf32>, vector<32x32xf32> -> vector<32x32xf32>
    %200 = arith.addf %196, %199 : vector<32x32xf32>
    %c504 = arith.constant 504 : index
    %c0_119 = arith.constant 0 : index
    %201 = vector.load %arg2[%c504, %c0_119] : memref<792x128xf32, #tpu.memory_space<vmem>>, vector<8x32xf32>
    %202 = vector.extract_strided_slice %187 {offsets = [96, 0], sizes = [32, 8], strides = [1, 1]} : vector<128x8xf32> to vector<32x8xf32>
    %cst_120 = arith.constant dense<0.000000e+00> : vector<32x32xf32>
    %203 = tpu.matmul %202, %201, %cst_120 {dimension_numbers = #tpu.dot_dimension_numbers<[1], [0], [0], [1], [0, 0, 1, 1], [], []>} : vector<32x8xf32>, vector<8x32xf32>, vector<32x32xf32> -> vector<32x32xf32>
    %204 = arith.addf %200, %203 : vector<32x32xf32>
    %205 = arith.addf %124, %204 : vector<32x32xf32>
    %c512 = arith.constant 512 : index
    %c0_121 = arith.constant 0 : index
    %206 = vector.load %arg2[%c512, %c0_121] : memref<792x128xf32, #tpu.memory_space<vmem>>, vector<32x64xf32>
    %c544 = arith.constant 544 : index
    %c0_122 = arith.constant 0 : index
    %207 = vector.load %arg2[%c544, %c0_122] : memref<792x128xf32, #tpu.memory_space<vmem>>, vector<64x32xf32>
    %cst_123 = arith.constant dense<0.000000e+00> : vector<32xf32>
    %208 = vector.multi_reduction <add>, %205, %cst_123 [1] : vector<32x32xf32> to vector<32xf32>
    %209 = vector.shape_cast %208 : vector<32xf32> to vector<32x1xf32>
    %cst_124 = arith.constant 3.200000e+01 : f32
    %210 = vector.broadcast %cst_124 : f32 to vector<32x1xf32>
    %211 = arith.divf %209, %210 : vector<32x1xf32>
    %212 = vector.broadcast %211 : vector<32x1xf32> to vector<32x32xf32>
    %213 = arith.subf %205, %212 : vector<32x32xf32>
    %214 = arith.mulf %213, %213 : vector<32x32xf32>
    %cst_125 = arith.constant dense<0.000000e+00> : vector<32xf32>
    %215 = vector.multi_reduction <add>, %214, %cst_125 [1] : vector<32x32xf32> to vector<32xf32>
    %216 = vector.shape_cast %215 : vector<32xf32> to vector<32x1xf32>
    %cst_126 = arith.constant 3.200000e+01 : f32
    %217 = vector.broadcast %cst_126 : f32 to vector<32x1xf32>
    %218 = arith.divf %216, %217 : vector<32x1xf32>
    %cst_127 = arith.constant 9.99999996E-13 : f32
    %219 = vector.broadcast %cst_127 : f32 to vector<32x1xf32>
    %220 = arith.addf %218, %219 : vector<32x1xf32>
    %221 = math.rsqrt %220 : vector<32x1xf32>
    %222 = vector.broadcast %221 : vector<32x1xf32> to vector<32x32xf32>
    %223 = arith.mulf %213, %222 : vector<32x32xf32>
    %224 = vector.broadcast %127 : vector<1x32xf32> to vector<32x32xf32>
    %225 = arith.mulf %223, %224 : vector<32x32xf32>
    %226 = vector.broadcast %128 : vector<1x32xf32> to vector<32x32xf32>
    %227 = arith.addf %225, %226 : vector<32x32xf32>
    %cst_128 = arith.constant dense<0.000000e+00> : vector<32x64xf32>
    %228 = tpu.matmul %227, %206, %cst_128 {dimension_numbers = #tpu.dot_dimension_numbers<[1], [0], [0], [1], [0, 0, 1, 1], [], []>} : vector<32x32xf32>, vector<32x64xf32>, vector<32x64xf32> -> vector<32x64xf32>
    %229 = vector.broadcast %131 : vector<1x64xf32> to vector<32x64xf32>
    %230 = arith.addf %228, %229 : vector<32x64xf32>
    %cst_129 = arith.constant 5.000000e-01 : f32
    %231 = vector.broadcast %cst_129 : f32 to vector<32x64xf32>
    %232 = arith.mulf %231, %230 : vector<32x64xf32>
    %cst_130 = arith.constant 4.471500e-02 : f32
    %233 = vector.broadcast %cst_130 : f32 to vector<32x64xf32>
    %234 = arith.mulf %233, %230 : vector<32x64xf32>
    %235 = arith.mulf %234, %230 : vector<32x64xf32>
    %236 = arith.mulf %235, %230 : vector<32x64xf32>
    %237 = arith.addf %230, %236 : vector<32x64xf32>
    %cst_131 = arith.constant 0.797884583 : f32
    %238 = vector.broadcast %cst_131 : f32 to vector<32x64xf32>
    %239 = arith.mulf %238, %237 : vector<32x64xf32>
    %240 = math.tanh %239 : vector<32x64xf32>
    %cst_132 = arith.constant 1.000000e+00 : f32
    %241 = vector.broadcast %cst_132 : f32 to vector<32x64xf32>
    %242 = arith.addf %241, %240 : vector<32x64xf32>
    %243 = arith.mulf %232, %242 : vector<32x64xf32>
    %cst_133 = arith.constant dense<0.000000e+00> : vector<32x32xf32>
    %244 = tpu.matmul %243, %207, %cst_133 {dimension_numbers = #tpu.dot_dimension_numbers<[1], [0], [0], [1], [0, 0, 1, 1], [], []>} : vector<32x64xf32>, vector<64x32xf32>, vector<32x32xf32> -> vector<32x32xf32>
    %245 = arith.addf %205, %244 : vector<32x32xf32>
    %246 = vector.broadcast %130 : vector<1x32xf32> to vector<32x32xf32>
    %247 = arith.addf %245, %246 : vector<32x32xf32>
    %c608 = arith.constant 608 : index
    %c0_134 = arith.constant 0 : index
    %248 = vector.load %arg2[%c608, %c0_134] : memref<792x128xf32, #tpu.memory_space<vmem>>, vector<1x32xf32>
    %c608_135 = arith.constant 608 : index
    %c32_136 = arith.constant 32 : index
    %249 = vector.load %arg2[%c608_135, %c32_136] : memref<792x128xf32, #tpu.memory_space<vmem>>, vector<1x32xf32>
    %c616 = arith.constant 616 : index
    %c0_137 = arith.constant 0 : index
    %250 = vector.load %arg2[%c616, %c0_137] : memref<792x128xf32, #tpu.memory_space<vmem>>, vector<1x128xf32>
    %c624 = arith.constant 624 : index
    %c0_138 = arith.constant 0 : index
    %251 = vector.load %arg2[%c624, %c0_138] : memref<792x128xf32, #tpu.memory_space<vmem>>, vector<8x32xf32>
    %c632 = arith.constant 632 : index
    %c0_139 = arith.constant 0 : index
    %252 = vector.load %arg2[%c632, %c0_139] : memref<792x128xf32, #tpu.memory_space<vmem>>, vector<32x128xf32>
    %cst_140 = arith.constant dense<0.000000e+00> : vector<8x32xf32>
    %253 = tpu.matmul %251, %247, %cst_140 {dimension_numbers = #tpu.dot_dimension_numbers<[1], [0], [0], [1], [0, 0, 1, 1], [], []>} : vector<8x32xf32>, vector<32x32xf32>, vector<8x32xf32> -> vector<8x32xf32>
    %cst_141 = arith.constant dense<0.000000e+00> : vector<8xf32>
    %254 = vector.multi_reduction <add>, %253, %cst_141 [1] : vector<8x32xf32> to vector<8xf32>
    %255 = vector.shape_cast %254 : vector<8xf32> to vector<8x1xf32>
    %cst_142 = arith.constant 3.200000e+01 : f32
    %256 = vector.broadcast %cst_142 : f32 to vector<8x1xf32>
    %257 = arith.divf %255, %256 : vector<8x1xf32>
    %258 = vector.broadcast %257 : vector<8x1xf32> to vector<8x32xf32>
    %259 = arith.subf %253, %258 : vector<8x32xf32>
    %260 = arith.mulf %259, %259 : vector<8x32xf32>
    %cst_143 = arith.constant dense<0.000000e+00> : vector<8xf32>
    %261 = vector.multi_reduction <add>, %260, %cst_143 [1] : vector<8x32xf32> to vector<8xf32>
    %262 = vector.shape_cast %261 : vector<8xf32> to vector<8x1xf32>
    %cst_144 = arith.constant 3.200000e+01 : f32
    %263 = vector.broadcast %cst_144 : f32 to vector<8x1xf32>
    %264 = arith.divf %262, %263 : vector<8x1xf32>
    %cst_145 = arith.constant 9.99999974E-6 : f32
    %265 = vector.broadcast %cst_145 : f32 to vector<8x1xf32>
    %266 = arith.addf %264, %265 : vector<8x1xf32>
    %267 = math.rsqrt %266 : vector<8x1xf32>
    %268 = vector.broadcast %267 : vector<8x1xf32> to vector<8x32xf32>
    %269 = arith.mulf %259, %268 : vector<8x32xf32>
    %270 = vector.broadcast %248 : vector<1x32xf32> to vector<8x32xf32>
    %271 = arith.mulf %269, %270 : vector<8x32xf32>
    %272 = vector.broadcast %249 : vector<1x32xf32> to vector<8x32xf32>
    %273 = arith.addf %271, %272 : vector<8x32xf32>
    %cst_146 = arith.constant dense<0.000000e+00> : vector<8x128xf32>
    %274 = tpu.matmul %273, %252, %cst_146 {dimension_numbers = #tpu.dot_dimension_numbers<[1], [0], [0], [1], [0, 0, 1, 1], [], []>} : vector<8x32xf32>, vector<32x128xf32>, vector<8x128xf32> -> vector<8x128xf32>
    %275 = vector.broadcast %250 : vector<1x128xf32> to vector<8x128xf32>
    %276 = arith.addf %274, %275 : vector<8x128xf32>
    %c0_147 = arith.constant 0 : index
    %c0_148 = arith.constant 0 : index
    %c0_149 = arith.constant 0 : index
    %277 = vector.load %arg3[%c0_147, %c0_148, %c0_149] : memref<1x8x128xf32, #tpu.memory_space<vmem>>, vector<1x8x128xf32>
    %278 = vector.shape_cast %277 : vector<1x8x128xf32> to vector<8x128xf32>
    %279 = vector.shape_cast %276 : vector<8x128xf32> to vector<1x8x128xf32>
    tpu.vector_store %arg3[%c0_147, %c0_148, %c0_149], %279 {strides = array<i32>} : memref<1x8x128xf32, #tpu.memory_space<vmem>>, vector<1x8x128xf32>,
    return
  }
  func.func @transform_0(%arg0: i32) -> (i32, i32) {
    %c0_i32 = arith.constant 0 : i32
    %c0_i32_0 = arith.constant 0 : i32
    return %arg0, %c0_i32 : i32, i32
  }
  func.func @transform_1(%arg0: i32) -> (i32, i32) {
    %c0_i32 = arith.constant 0 : i32
    %c0_i32_0 = arith.constant 0 : i32
    %c0_i32_1 = arith.constant 0 : i32
    return %c0_i32, %c0_i32_0 : i32, i32
  }
  func.func @transform_2(%arg0: i32) -> (i32, i32, i32) {
    %c0_i32 = arith.constant 0 : i32
    %c0_i32_0 = arith.constant 0 : i32
    %c0_i32_1 = arith.constant 0 : i32
    return %arg0, %c0_i32, %c0_i32_0 : i32, i32, i32
  }
}

</mosaic_0001>

<llo_original>
// kernel: vit_forward.1
$region0: #{vit_forward.1}
  #allocation0 [shape = 'u32[]', space=smem, size = 0x4, offset = 0x4, fixed_abs, tag = 'smem constant byte address 0x4 - core index']
  #allocation1 [shape = 'u32[72,128]{1,0:T(1,128)}', space=vmem, size = 0x9000, scoped, tag = 'internal scratch']
  #allocation2 [shape = 'f32[128,24]{1,0:T(8,128)}', space=vmem, size = 0x10000, scoped, tag = 'scratch operand']
  %s0 = inlined_call_operand.vmem [shape: f32[32,32], index: 0, kind: input, shape index: {}]
  %s1 = inlined_call_operand.hbm [shape: f32[792,128], index: 1, kind: input, shape index: {}]
  %s2 = inlined_call_operand.vmem [shape: f32[1,8,128], index: 2, kind: output, shape index: {}]
  %s3 = sld [smem:[#allocation0]]
  $region22: #{vit_forward.1} parent=0
    _
  %s5 = ssub.s32 1, %s3
  %s6 = scalar_select 0, %s5, %s3
  $region1: #{vit_forward.1} parent=0
    #allocation3 [shape = 'u8[405504]{0}', space=vmem, size = 0x63000, scoped, tag = 'input window, operand 1, single buffered']
    #allocation4 [shape = 's32[1]{0}', space=sflag, size = 0x4, scoped, tag = 'scoped memory for vit_forward.1']
    %7 = vsyncpa [#allocation4], 0
    // Predicated region
    $region2: #{vit_forward.1} parent=1 // pred_check
      _
    $region3: #{vit_forward.1} parent=1 // pred_check_branch
      %9 = sbr.rel (0) target = $region5
    $region4: #{vit_forward.1} parent=1 // pred_region
      _
    $region5: #{vit_forward.1} parent=1 // pred_fallthru
      _
    // Predicated region
    $region6: #{vit_forward.1} parent=1 // pred_check
      _
    $region7: #{vit_forward.1} parent=1 // pred_check_branch
      %11 = sbr.rel (0) target = $region9
    $region8: #{vit_forward.1} parent=1 // pred_region
      %13 = vsyncadd [#allocation4], 0
      %s14 = sshll.u32 %s1, 4
      %s15 = int_to_ptr.hbm [resolvable:$true] %s14
      %s16 = sshll.u32 [#allocation3], 4
      %s17 = int_to_ptr.vmem [resolvable:$true] %s16
      %22 = dma.hbm_to_vmem [thread:$0]  %s15, 12672, %s17, [#allocation4], 128, 128, 8
    $region9: #{vit_forward.1} parent=1 // pred_fallthru
      _
    // Predicated region
    $region10: #{vit_forward.1} parent=1 // pred_check
      _
    $region11: #{vit_forward.1} parent=1 // pred_check_branch
      %24 = sbr.rel (0) target = $region13
    $region12: #{vit_forward.1} parent=1 // pred_region
      %26 = dma.done [#allocation4], 12672
    $region13: #{vit_forward.1} parent=1 // pred_fallthru
      _
    %v27 = vld [vmem:[%s0] sm:$0xff]
    %v28 = vld [vmem:[%s0 + $0x8] sm:$0xff]
    %v29 = vld [vmem:[%s0 + $0x10] sm:$0xff]
    %v30 = vld [vmem:[%s0 + $0x18] sm:$0xff]
    %v31 = vld [vmem:[#allocation3 + $0x298] sm:$0xff]
    %v32 = vld [vmem:[#allocation3 + $0x2a0] sm:$0xff]
    %v33 = vld [vmem:[#allocation3 + $0x2a8] sm:$0xff]
    %v34 = vld [vmem:[#allocation3 + $0x2b0] sm:$0xff]
    %v35 = vld [vmem:[#allocation3 + $0x2b8] sm:$0xff]
    %v36 = vld [vmem:[#allocation3 + $0x2c0] sm:$0xff]
    %v37 = vld [vmem:[#allocation3 + $0x2c8] sm:$0xff]
    %v38 = vld [vmem:[#allocation3 + $0x2d0] sm:$0xff]
    %v39 = vld [vmem:[#allocation3 + $0x2d8] sm:$0xff]
    %v40 = vld [vmem:[#allocation3 + $0x2e0] sm:$0xff]
    %v41 = vld [vmem:[#allocation3 + $0x2e8] sm:$0xff]
    %v42 = vld [vmem:[#allocation3 + $0x2f0] sm:$0xff]
    %v43 = vld [vmem:[#allocation3 + $0x2f8] sm:$0xff]
    %v44 = vld [vmem:[#allocation3 + $0x300] sm:$0xff]
    %v45 = vld [vmem:[#allocation3 + $0x308] sm:$0xff]
    %v46 = vld [vmem:[#allocation3 + $0x310] sm:$0xff]
    %v47 = vld [vmem:[#allocation3] sm:$0x1]
    %v48 = vld [vmem:[#allocation3 + $0x8] sm:$0x1]
    %vm49 = vcmask 261120
    %v50 = vsel %vm49, %v27, 0.0
    %51 = vadd.xlane.f32.xlu0 %v50
    %v52 = vpop.xlane.xlu0 %51
    %v53 = vsel %vm49, %v28, 0.0
    %54 = vadd.xlane.f32.xlu0 %v53
    %v55 = vpop.xlane.xlu0 %54
    %v56 = vsel %vm49, %v29, 0.0
    %57 = vadd.xlane.f32.xlu0 %v56
    %v58 = vpop.xlane.xlu0 %57
    %v59 = vsel %vm49, %v30, 0.0
    %60 = vadd.xlane.f32.xlu0 %v59
    %v61 = vpop.xlane.xlu0 %60
    %v62 = vrcp.pop 32.0
    %v63 = vmul.f32 32.0, %v62
    %v64 = vsub.f32 1.0, %v63
    %v65 = vmul.f32 %v62, %v64
    %v66 = vadd.f32 %v62, %v65
    %vm67 = vweird.f32 %v62
    %v68 = vsel %vm67, %v62, %v66
    %v69 = vmul.f32 %v52, %v68
    %v70 = vmul.f32 %v55, %v68
    %v71 = vmul.f32 %v58, %v68
    %v72 = vmul.f32 %v61, %v68
    %v73 = vsub.f32 %v27, %v69
    %v74 = vsub.f32 %v28, %v70
    %v75 = vsub.f32 %v29, %v71
    %v76 = vsub.f32 %v30, %v72
    %v77 = vmul.f32 %v73, %v73
    %v78 = vmul.f32 %v74, %v74
    %v79 = vmul.f32 %v75, %v75
    %v80 = vmul.f32 %v76, %v76
    %v81 = vsel %vm49, %v77, 0.0
    %82 = vadd.xlane.f32.xlu0 %v81
    %v83 = vpop.xlane.xlu0 %82
    %v84 = vsel %vm49, %v78, 0.0
    %85 = vadd.xlane.f32.xlu0 %v84
    %v86 = vpop.xlane.xlu0 %85
    %v87 = vsel %vm49, %v79, 0.0
    %88 = vadd.xlane.f32.xlu0 %v87
    %v89 = vpop.xlane.xlu0 %88
    %v90 = vsel %vm49, %v80, 0.0
    %91 = vadd.xlane.f32.xlu0 %v90
    %v92 = vpop.xlane.xlu0 %91
    %v93 = vmul.f32 %v83, %v68
    %v94 = vmul.f32 %v86, %v68
    %v95 = vmul.f32 %v89, %v68
    %v96 = vmul.f32 %v92, %v68
    %v97 = vadd.f32 %v93, 1e-12
    %v98 = vadd.f32 %v94, 1e-12
    %v99 = vadd.f32 %v95, 1e-12
    %v100 = vadd.f32 %v96, 1e-12
    %v101 = vrsqrt.pop %v97
    %v102 = vmul.f32 %v101, %v97
    %v103 = vmul.f32 %v102, %v101
    %v104 = vmul.f32 0.5, %v103
    %v105 = vsub.f32 1.5, %v104
    %v106 = vmul.f32 %v101, %v105
    %vm107 = vweird.f32 %v97
    %vm108 = vweird.f32 %v101
    %vm109 = vmor %vm107, %vm108
    %v110 = vsel %vm109, %v101, %v106
    %v111 = vrsqrt.pop %v98
    %v112 = vmul.f32 %v111, %v98
    %v113 = vmul.f32 %v112, %v111
    %v114 = vmul.f32 0.5, %v113
    %v115 = vsub.f32 1.5, %v114
    %v116 = vmul.f32 %v111, %v115
    %vm117 = vweird.f32 %v98
    %vm118 = vweird.f32 %v111
    %vm119 = vmor %vm117, %vm118
    %v120 = vsel %vm119, %v111, %v116
    %v121 = vrsqrt.pop %v99
    %v122 = vmul.f32 %v121, %v99
    %v123 = vmul.f32 %v122, %v121
    %v124 = vmul.f32 0.5, %v123
    %v125 = vsub.f32 1.5, %v124
    %v126 = vmul.f32 %v121, %v125
    %vm127 = vweird.f32 %v99
    %vm128 = vweird.f32 %v121
    %vm129 = vmor %vm127, %vm128
    %v130 = vsel %vm129, %v121, %v126
    %v131 = vrsqrt.pop %v100
    %v132 = vmul.f32 %v131, %v100
    %v133 = vmul.f32 %v132, %v131
    %v134 = vmul.f32 0.5, %v133
    %v135 = vsub.f32 1.5, %v134
    %v136 = vmul.f32 %v131, %v135
    %vm137 = vweird.f32 %v100
    %vm138 = vweird.f32 %v131
    %vm139 = vmor %vm137, %vm138
    %v140 = vsel %vm139, %v131, %v136
    %v141 = vmul.f32 %v73, %v110
    %v142 = vmul.f32 %v74, %v120
    %v143 = vmul.f32 %v75, %v130
    %v144 = vmul.f32 %v76, %v140
    %v145 = vperm.slane %v47, 0
    %v146 = vmul.f32 %v141, %v145
    %v147 = vmul.f32 %v142, %v145
    %v148 = vmul.f32 %v143, %v145
    %v149 = vmul.f32 %v144, %v145
    %151 = vrot.lane.b32.xlu0 %v145, 96
    %v152 = vpop.permute.xlu0 %151
    %v154 = vadd.f32 %v146, %v152
    %v155 = vadd.f32 %v147, %v152
    %v156 = vadd.f32 %v148, %v152
    %v157 = vadd.f32 %v149, %v152
    %v158 = vld [vmem:[#allocation3 + $0x30] sm:$0xff]
    %v159 = vld [vmem:[#allocation3 + $0x38] sm:$0xff]
    %v160 = vld [vmem:[#allocation3 + $0x40] sm:$0xff]
    %v161 = vld [vmem:[#allocation3 + $0x48] sm:$0xff]
    %v162 = vld [vmem:[#allocation3 + $0x10] sm:$0x1]
    %v163 = vperm.slane %v162, 0
    %v165 = vsel %vm49, %v154, 0
    %v168 = vsel %vm49, %v155, 0
    %v171 = vsel %vm49, %v156, 0
    %v174 = vsel %vm49, %v157, 0
    %176 = vmatpush.msra.mxu0 0.0
    %177 = vmatpush.msra.mxu0 0.0
    %178 = vmatpush.msra.mxu0 0.0
    %179 = vmatpush.msra.mxu0 0.0
    %180 = vmatpush.msra.mxu0 0.0
    %181 = vmatpush.msra.mxu0 0.0
    %182 = vmatpush.msra.mxu0 0.0
    %183 = vmatpush.msra.mxu0 0.0
    %184 = vmatpush.msra.mxu0 0.0
    %185 = vmatpush.msra.mxu0 0.0
    %186 = vmatpush.msra.mxu0 0.0
    %187 = vmatpush.msra.mxu0 0.0
    %188 = vmatpush.msra.mxu0 %v161
    %189 = vmatpush.msra.mxu0 %v160
    %190 = vmatpush.msra.mxu0 %v159
    %191 = vmatpush.msra.mxu0 %v158
    %192 = vmatmul.f32.gmra.mxu0 %v165
    %v193 = vpop.f32.mrf.mxu0
    %v194 = vadd.f32 %v163, %v193
    %195 = vmatmul.f32.gmra.mxu0 %v168
    %v196 = vpop.f32.mrf.mxu0
    %v197 = vadd.f32 %v163, %v196
    %198 = vmatmul.f32.gmra.mxu0 %v171
    %v199 = vpop.f32.mrf.mxu0
    %v200 = vadd.f32 %v163, %v199
    %201 = vmatmul.f32.gmra.mxu0 %v174
    %v202 = vpop.f32.mrf.mxu0
    %v203 = vadd.f32 %v163, %v202
    %204 = vdwg.mxu0
    %vm205 = vcmask 195584
    %206 = vst.msk [vmem:[#allocation2] sm:$0xff] %vm205, %v194
    %207 = vst.msk [vmem:[#allocation2 + $0x8] sm:$0xff] %vm205, %v197
    %208 = vst.msk [vmem:[#allocation2 + $0x10] sm:$0xff] %vm205, %v200
    %209 = vst.msk [vmem:[#allocation2 + $0x18] sm:$0xff] %vm205, %v203
    %v210 = vld [vmem:[#allocation3 + $0x50] sm:$0xff]
    %v211 = vld [vmem:[#allocation3 + $0x58] sm:$0xff]
    %v212 = vld [vmem:[#allocation3 + $0x60] sm:$0xff]
    %v213 = vld [vmem:[#allocation3 + $0x68] sm:$0xff]
    %v214 = vld [vmem:[#allocation3 + $0x18] sm:$0x1]
    %v215 = vperm.slane %v214, 0
    %216 = vmatpush.msra.mxu0 0.0
    %217 = vmatpush.msra.mxu0 0.0
    %218 = vmatpush.msra.mxu0 0.0
    %219 = vmatpush.msra.mxu0 0.0
    %220 = vmatpush.msra.mxu0 0.0
    %221 = vmatpush.msra.mxu0 0.0
    %222 = vmatpush.msra.mxu0 0.0
    %223 = vmatpush.msra.mxu0 0.0
    %224 = vmatpush.msra.mxu0 0.0
    %225 = vmatpush.msra.mxu0 0.0
    %226 = vmatpush.msra.mxu0 0.0
    %227 = vmatpush.msra.mxu0 0.0
    %228 = vmatpush.msra.mxu0 %v213
    %229 = vmatpush.msra.mxu0 %v212
    %230 = vmatpush.msra.mxu0 %v211
    %231 = vmatpush.msra.mxu0 %v210
    %232 = vmatmul.f32.gmra.mxu0 %v165
    %v233 = vpop.f32.mrf.mxu0
    %v234 = vadd.f32 %v215, %v233
    %235 = vmatmul.f32.gmra.mxu0 %v168
    %v236 = vpop.f32.mrf.mxu0
    %v237 = vadd.f32 %v215, %v236
    %238 = vmatmul.f32.gmra.mxu0 %v171
    %v239 = vpop.f32.mrf.mxu0
    %v240 = vadd.f32 %v215, %v239
    %241 = vmatmul.f32.gmra.mxu0 %v174
    %v242 = vpop.f32.mrf.mxu0
    %v243 = vadd.f32 %v215, %v242
    %244 = vdwg.mxu0
    %245 = vst.msk [vmem:[#allocation2 + $0x20] sm:$0xff] %vm205, %v234
    %246 = vst.msk [vmem:[#allocation2 + $0x28] sm:$0xff] %vm205, %v237
    %247 = vst.msk [vmem:[#allocation2 + $0x30] sm:$0xff] %vm205, %v240
    %248 = vst.msk [vmem:[#allocation2 + $0x38] sm:$0xff] %vm205, %v243
    %v249 = vld [vmem:[#allocation3 + $0x70] sm:$0xff]
    %v250 = vld [vmem:[#allocation3 + $0x78] sm:$0xff]
    %v251 = vld [vmem:[#allocation3 + $0x80] sm:$0xff]
    %v252 = vld [vmem:[#allocation3 + $0x88] sm:$0xff]
    %v253 = vld [vmem:[#allocation3 + $0x20] sm:$0x1]
    %v254 = vperm.slane %v253, 0
    %255 = vmatpush.msra.mxu0 0.0
    %256 = vmatpush.msra.mxu0 0.0
    %257 = vmatpush.msra.mxu0 0.0
    %258 = vmatpush.msra.mxu0 0.0
    %259 = vmatpush.msra.mxu0 0.0
    %260 = vmatpush.msra.mxu0 0.0
    %261 = vmatpush.msra.mxu0 0.0
    %262 = vmatpush.msra.mxu0 0.0
    %263 = vmatpush.msra.mxu0 0.0
    %264 = vmatpush.msra.mxu0 0.0
    %265 = vmatpush.msra.mxu0 0.0
    %266 = vmatpush.msra.mxu0 0.0
    %267 = vmatpush.msra.mxu0 %v252
    %268 = vmatpush.msra.mxu0 %v251
    %269 = vmatpush.msra.mxu0 %v250
    %270 = vmatpush.msra.mxu0 %v249
    %271 = vmatmul.f32.gmra.mxu0 %v165
    %v272 = vpop.f32.mrf.mxu0
    %v273 = vadd.f32 %v254, %v272
    %274 = vmatmul.f32.gmra.mxu0 %v168
    %v275 = vpop.f32.mrf.mxu0
    %v276 = vadd.f32 %v254, %v275
    %277 = vmatmul.f32.gmra.mxu0 %v171
    %v278 = vpop.f32.mrf.mxu0
    %v279 = vadd.f32 %v254, %v278
    %280 = vmatmul.f32.gmra.mxu0 %v174
    %v281 = vpop.f32.mrf.mxu0
    %v282 = vadd.f32 %v254, %v281
    %283 = vdwg.mxu0
    %284 = vst.msk [vmem:[#allocation2 + $0x40] sm:$0xff] %vm205, %v273
    %285 = vst.msk [vmem:[#allocation2 + $0x48] sm:$0xff] %vm205, %v276
    %286 = vst.msk [vmem:[#allocation2 + $0x50] sm:$0xff] %vm205, %v279
    %287 = vst.msk [vmem:[#allocation2 + $0x58] sm:$0xff] %vm205, %v282
    %v288 = vld [vmem:[#allocation3 + $0x90] sm:$0xff]
    %v289 = vld [vmem:[#allocation3 + $0x98] sm:$0xff]
    %v290 = vld [vmem:[#allocation3 + $0xa0] sm:$0xff]
    %v291 = vld [vmem:[#allocation3 + $0xa8] sm:$0xff]
    %v292 = vld [vmem:[#allocation3 + $0x28] sm:$0x1]
    %v293 = vperm.slane %v292, 0
    %294 = vmatpush.msra.mxu0 0.0
    %295 = vmatpush.msra.mxu0 0.0
    %296 = vmatpush.msra.mxu0 0.0
    %297 = vmatpush.msra.mxu0 0.0
    %298 = vmatpush.msra.mxu0 0.0
    %299 = vmatpush.msra.mxu0 0.0
    %300 = vmatpush.msra.mxu0 0.0
    %301 = vmatpush.msra.mxu0 0.0
    %302 = vmatpush.msra.mxu0 0.0
    %303 = vmatpush.msra.mxu0 0.0
    %304 = vmatpush.msra.mxu0 0.0
    %305 = vmatpush.msra.mxu0 0.0
    %306 = vmatpush.msra.mxu0 %v291
    %307 = vmatpush.msra.mxu0 %v290
    %308 = vmatpush.msra.mxu0 %v289
    %309 = vmatpush.msra.mxu0 %v288
    %310 = vmatmul.f32.gmra.mxu0 %v165
    %v311 = vpop.f32.mrf.mxu0
    %v312 = vadd.f32 %v293, %v311
    %313 = vmatmul.f32.gmra.mxu0 %v168
    %v314 = vpop.f32.mrf.mxu0
    %v315 = vadd.f32 %v293, %v314
    %316 = vmatmul.f32.gmra.mxu0 %v171
    %v317 = vpop.f32.mrf.mxu0
    %v318 = vadd.f32 %v293, %v317
    %319 = vmatmul.f32.gmra.mxu0 %v174
    %v320 = vpop.f32.mrf.mxu0
    %v321 = vadd.f32 %v293, %v320
    %322 = vdwg.mxu0
    %323 = vst.msk [vmem:[#allocation2 + $0x60] sm:$0xff] %vm205, %v312
    %324 = vst.msk [vmem:[#allocation2 + $0x68] sm:$0xff] %vm205, %v315
    %325 = vst.msk [vmem:[#allocation2 + $0x70] sm:$0xff] %vm205, %v318
    %326 = vst.msk [vmem:[#allocation2 + $0x78] sm:$0xff] %vm205, %v321
    %v327 = vld [vmem:[#allocation2] sm:$0xff]
    %v328 = vld [vmem:[#allocation2 + $0x8] sm:$0xff]
    %v329 = vld [vmem:[#allocation2 + $0x10] sm:$0xff]
    %v330 = vld [vmem:[#allocation2 + $0x18] sm:$0xff]
    %v331 = vld [vmem:[#allocation2 + $0x20] sm:$0xff]
    %v332 = vld [vmem:[#allocation2 + $0x28] sm:$0xff]
    %v333 = vld [vmem:[#allocation2 + $0x30] sm:$0xff]
    %v334 = vld [vmem:[#allocation2 + $0x38] sm:$0xff]
    %v335 = vld [vmem:[#allocation2 + $0x40] sm:$0xff]
    %v336 = vld [vmem:[#allocation2 + $0x48] sm:$0xff]
    %v337 = vld [vmem:[#allocation2 + $0x50] sm:$0xff]
    %v338 = vld [vmem:[#allocation2 + $0x58] sm:$0xff]
    %v339 = vld [vmem:[#allocation2 + $0x60] sm:$0xff]
    %v340 = vld [vmem:[#allocation2 + $0x68] sm:$0xff]
    %v341 = vld [vmem:[#allocation2 + $0x70] sm:$0xff]
    %v342 = vld [vmem:[#allocation2 + $0x78] sm:$0xff]
    %359 = vrot.lane.b32.xlu0 %v327, 120
    %v360 = vpop.permute.xlu0 %359
    %361 = vrot.lane.b32.xlu0 %v328, 120
    %v362 = vpop.permute.xlu0 %361
    %363 = vrot.lane.b32.xlu0 %v329, 120
    %v364 = vpop.permute.xlu0 %363
    %365 = vrot.lane.b32.xlu0 %v330, 120
    %v366 = vpop.permute.xlu0 %365
    %367 = vrot.lane.b32.xlu0 %v331, 120
    %v368 = vpop.permute.xlu0 %367
    %369 = vrot.lane.b32.xlu0 %v332, 120
    %v370 = vpop.permute.xlu0 %369
    %371 = vrot.lane.b32.xlu0 %v333, 120
    %v372 = vpop.permute.xlu0 %371
    %373 = vrot.lane.b32.xlu0 %v334, 120
    %v374 = vpop.permute.xlu0 %373
    %375 = vrot.lane.b32.xlu0 %v335, 120
    %v376 = vpop.permute.xlu0 %375
    %377 = vrot.lane.b32.xlu0 %v336, 120
    %v378 = vpop.permute.xlu0 %377
    %379 = vrot.lane.b32.xlu0 %v337, 120
    %v380 = vpop.permute.xlu0 %379
    %381 = vrot.lane.b32.xlu0 %v338, 120
    %v382 = vpop.permute.xlu0 %381
    %383 = vrot.lane.b32.xlu0 %v339, 120
    %v384 = vpop.permute.xlu0 %383
    %385 = vrot.lane.b32.xlu0 %v340, 120
    %v386 = vpop.permute.xlu0 %385
    %387 = vrot.lane.b32.xlu0 %v341, 120
    %v388 = vpop.permute.xlu0 %387
    %389 = vrot.lane.b32.xlu0 %v342, 120
    %v390 = vpop.permute.xlu0 %389
    %vm391 = vcmask 64512
    %v392 = vsel %vm391, %v327, 0
    %v394 = vsel %vm391, %v328, 0
    %v396 = vsel %vm391, %v329, 0
    %v398 = vsel %vm391, %v330, 0
    %v400 = vsel %vm391, %v331, 0
    %v402 = vsel %vm391, %v332, 0
    %v404 = vsel %vm391, %v333, 0
    %v406 = vsel %vm391, %v334, 0
    %v408 = vsel %vm391, %v335, 0
    %v410 = vsel %vm391, %v336, 0
    %v412 = vsel %vm391, %v337, 0
    %v414 = vsel %vm391, %v338, 0
    %v416 = vsel %vm391, %v339, 0
    %v418 = vsel %vm391, %v340, 0
    %v420 = vsel %vm391, %v341, 0
    %v422 = vsel %vm391, %v342, 0
    %v424 = vsel %vm391, %v360, 0
    %v426 = vsel %vm391, %v362, 0
    %v428 = vsel %vm391, %v364, 0
    %v430 = vsel %vm391, %v366, 0
    %v432 = vsel %vm391, %v368, 0
    %v434 = vsel %vm391, %v370, 0
    %v436 = vsel %vm391, %v372, 0
    %v438 = vsel %vm391, %v374, 0
    %v440 = vsel %vm391, %v376, 0
    %v442 = vsel %vm391, %v378, 0
    %v444 = vsel %vm391, %v380, 0
    %v446 = vsel %vm391, %v382, 0
    %v448 = vsel %vm391, %v384, 0
    %v450 = vsel %vm391, %v386, 0
    %v452 = vsel %vm391, %v388, 0
    %v454 = vsel %vm391, %v390, 0
    %456 = vmatpush.xpose.msra.mxu0 %v454
    %457 = vmatpush.xpose.msra.mxu0 %v452
    %458 = vmatpush.xpose.msra.mxu0 %v450
    %459 = vmatpush.xpose.msra.mxu0 %v448
    %460 = vmatpush.xpose.msra.mxu0 %v446
    %461 = vmatpush.xpose.msra.mxu0 %v444
    %462 = vmatpush.xpose.msra.mxu0 %v442
    %463 = vmatpush.xpose.msra.mxu0 %v440
    %464 = vmatpush.xpose.msra.mxu0 %v438
    %465 = vmatpush.xpose.msra.mxu0 %v436
    %466 = vmatpush.xpose.msra.mxu0 %v434
    %467 = vmatpush.xpose.msra.mxu0 %v432
    %468 = vmatpush.xpose.msra.mxu0 %v430
    %469 = vmatpush.xpose.msra.mxu0 %v428
    %470 = vmatpush.xpose.msra.mxu0 %v426
    %471 = vmatpush.xpose.msra.mxu0 %v424
    %472 = vmatmul.f32.gmra.mxu0 %v392
    %v473 = vpop.f32.mrf.mxu0
    %v474 = vadd.f32 %v31, %v473
    %475 = vmatmul.f32.gmra.mxu0 %v394
    %v476 = vpop.f32.mrf.mxu0
    %v477 = vadd.f32 %v32, %v476
    %478 = vmatmul.f32.gmra.mxu0 %v396
    %v479 = vpop.f32.mrf.mxu0
    %v480 = vadd.f32 %v33, %v479
    %481 = vmatmul.f32.gmra.mxu0 %v398
    %v482 = vpop.f32.mrf.mxu0
    %v483 = vadd.f32 %v34, %v482
    %484 = vmatmul.f32.gmra.mxu0 %v400
    %v485 = vpop.f32.mrf.mxu0
    %v486 = vadd.f32 %v35, %v485
    %487 = vmatmul.f32.gmra.mxu0 %v402
    %v488 = vpop.f32.mrf.mxu0
    %v489 = vadd.f32 %v36, %v488
    %490 = vmatmul.f32.gmra.mxu0 %v404
    %v491 = vpop.f32.mrf.mxu0
    %v492 = vadd.f32 %v37, %v491
    %493 = vmatmul.f32.gmra.mxu0 %v406
    %v494 = vpop.f32.mrf.mxu0
    %v495 = vadd.f32 %v38, %v494
    %496 = vmatmul.f32.gmra.mxu0 %v408
    %v497 = vpop.f32.mrf.mxu0
    %v498 = vadd.f32 %v39, %v497
    %499 = vmatmul.f32.gmra.mxu0 %v410
    %v500 = vpop.f32.mrf.mxu0
    %v501 = vadd.f32 %v40, %v500
    %502 = vmatmul.f32.gmra.mxu0 %v412
    %v503 = vpop.f32.mrf.mxu0
    %v504 = vadd.f32 %v41, %v503
    %505 = vmatmul.f32.gmra.mxu0 %v414
    %v506 = vpop.f32.mrf.mxu0
    %v507 = vadd.f32 %v42, %v506
    %508 = vmatmul.f32.gmra.mxu0 %v416
    %v509 = vpop.f32.mrf.mxu0
    %v510 = vadd.f32 %v43, %v509
    %511 = vmatmul.f32.gmra.mxu0 %v418
    %v512 = vpop.f32.mrf.mxu0
    %v513 = vadd.f32 %v44, %v512
    %514 = vmatmul.f32.gmra.mxu0 %v420
    %v515 = vpop.f32.mrf.mxu0
    %v516 = vadd.f32 %v45, %v515
    %517 = vmatmul.f32.gmra.mxu0 %v422
    %v518 = vpop.f32.mrf.mxu0
    %v519 = vadd.f32 %v46, %v518
    %520 = vdwg.mxu0
    %v521 = vmul.f32 %v474, 1.442695
    %v522 = vpow.pop %v521
    %v523 = vmul.f32 %v477, 1.442695
    %v524 = vpow.pop %v523
    %v525 = vmul.f32 %v480, 1.442695
    %v526 = vpow.pop %v525
    %v527 = vmul.f32 %v483, 1.442695
    %v528 = vpow.pop %v527
    %v529 = vmul.f32 %v486, 1.442695
    %v530 = vpow.pop %v529
    %v531 = vmul.f32 %v489, 1.442695
    %v532 = vpow.pop %v531
    %v533 = vmul.f32 %v492, 1.442695
    %v534 = vpow.pop %v533
    %v535 = vmul.f32 %v495, 1.442695
    %v536 = vpow.pop %v535
    %v537 = vmul.f32 %v498, 1.442695
    %v538 = vpow.pop %v537
    %v539 = vmul.f32 %v501, 1.442695
    %v540 = vpow.pop %v539
    %v541 = vmul.f32 %v504, 1.442695
    %v542 = vpow.pop %v541
    %v543 = vmul.f32 %v507, 1.442695
    %v544 = vpow.pop %v543
    %v545 = vmul.f32 %v510, 1.442695
    %v546 = vpow.pop %v545
    %v547 = vmul.f32 %v513, 1.442695
    %v548 = vpow.pop %v547
    %v549 = vmul.f32 %v516, 1.442695
    %v550 = vpow.pop %v549
    %v551 = vmul.f32 %v519, 1.442695
    %v552 = vpow.pop %v551
    %553 = vadd.xlane.f32.xlu0 %v522
    %v554 = vpop.xlane.xlu0 %553
    %555 = vadd.xlane.f32.xlu0 %v524
    %v556 = vpop.xlane.xlu0 %555
    %557 = vadd.xlane.f32.xlu0 %v526
    %v558 = vpop.xlane.xlu0 %557
    %559 = vadd.xlane.f32.xlu0 %v528
    %v560 = vpop.xlane.xlu0 %559
    %561 = vadd.xlane.f32.xlu0 %v530
    %v562 = vpop.xlane.xlu0 %561
    %563 = vadd.xlane.f32.xlu0 %v532
    %v564 = vpop.xlane.xlu0 %563
    %565 = vadd.xlane.f32.xlu0 %v534
    %v566 = vpop.xlane.xlu0 %565
    %567 = vadd.xlane.f32.xlu0 %v536
    %v568 = vpop.xlane.xlu0 %567
    %569 = vadd.xlane.f32.xlu0 %v538
    %v570 = vpop.xlane.xlu0 %569
    %571 = vadd.xlane.f32.xlu0 %v540
    %v572 = vpop.xlane.xlu0 %571
    %573 = vadd.xlane.f32.xlu0 %v542
    %v574 = vpop.xlane.xlu0 %573
    %575 = vadd.xlane.f32.xlu0 %v544
    %v576 = vpop.xlane.xlu0 %575
    %577 = vadd.xlane.f32.xlu0 %v546
    %v578 = vpop.xlane.xlu0 %577
    %579 = vadd.xlane.f32.xlu0 %v548
    %v580 = vpop.xlane.xlu0 %579
    %581 = vadd.xlane.f32.xlu0 %v550
    %v582 = vpop.xlane.xlu0 %581
    %583 = vadd.xlane.f32.xlu0 %v552
    %v584 = vpop.xlane.xlu0 %583
    %v585 = vrcp.pop %v554
    %v586 = vrcp.pop %v556
    %v587 = vrcp.pop %v558
    %v588 = vrcp.pop %v560
    %v589 = vrcp.pop %v562
    %v590 = vrcp.pop %v564
    %v591 = vrcp.pop %v566
    %v592 = vrcp.pop %v568
    %v593 = vrcp.pop %v570
    %v594 = vrcp.pop %v572
    %v595 = vrcp.pop %v574
    %v596 = vrcp.pop %v576
    %v597 = vrcp.pop %v578
    %v598 = vrcp.pop %v580
    %v599 = vrcp.pop %v582
    %v600 = vrcp.pop %v584
    %v601 = vmul.f32 %v522, %v585
    %v602 = vmul.f32 %v524, %v586
    %v603 = vmul.f32 %v526, %v587
    %v604 = vmul.f32 %v528, %v588
    %v605 = vmul.f32 %v530, %v589
    %v606 = vmul.f32 %v532, %v590
    %v607 = vmul.f32 %v534, %v591
    %v608 = vmul.f32 %v536, %v592
    %v609 = vmul.f32 %v538, %v593
    %v610 = vmul.f32 %v540, %v594
    %v611 = vmul.f32 %v542, %v595
    %v612 = vmul.f32 %v544, %v596
    %v613 = vmul.f32 %v546, %v597
    %v614 = vmul.f32 %v548, %v598
    %v615 = vmul.f32 %v550, %v599
    %v616 = vmul.f32 %v552, %v600
    %617 = vrot.lane.b32.xlu0 %v327, 112
    %v618 = vpop.permute.xlu0 %617
    %619 = vrot.lane.b32.xlu0 %v328, 112
    %v620 = vpop.permute.xlu0 %619
    %621 = vrot.lane.b32.xlu0 %v329, 112
    %v622 = vpop.permute.xlu0 %621
    %623 = vrot.lane.b32.xlu0 %v330, 112
    %v624 = vpop.permute.xlu0 %623
    %625 = vrot.lane.b32.xlu0 %v331, 112
    %v626 = vpop.permute.xlu0 %625
    %627 = vrot.lane.b32.xlu0 %v332, 112
    %v628 = vpop.permute.xlu0 %627
    %629 = vrot.lane.b32.xlu0 %v333, 112
    %v630 = vpop.permute.xlu0 %629
    %631 = vrot.lane.b32.xlu0 %v334, 112
    %v632 = vpop.permute.xlu0 %631
    %633 = vrot.lane.b32.xlu0 %v335, 112
    %v634 = vpop.permute.xlu0 %633
    %635 = vrot.lane.b32.xlu0 %v336, 112
    %v636 = vpop.permute.xlu0 %635
    %637 = vrot.lane.b32.xlu0 %v337, 112
    %v638 = vpop.permute.xlu0 %637
    %639 = vrot.lane.b32.xlu0 %v338, 112
    %v640 = vpop.permute.xlu0 %639
    %641 = vrot.lane.b32.xlu0 %v339, 112
    %v642 = vpop.permute.xlu0 %641
    %643 = vrot.lane.b32.xlu0 %v340, 112
    %v644 = vpop.permute.xlu0 %643
    %645 = vrot.lane.b32.xlu0 %v341, 112
    %v646 = vpop.permute.xlu0 %645
    %647 = vrot.lane.b32.xlu0 %v342, 112
    %v648 = vpop.permute.xlu0 %647
    %665 = vmatpush.msra.mxu0 %v648
    %666 = vmatpush.msra.mxu0 %v646
    %667 = vmatpush.msra.mxu0 %v644
    %668 = vmatpush.msra.mxu0 %v642
    %669 = vmatpush.msra.mxu0 %v640
    %670 = vmatpush.msra.mxu0 %v638
    %671 = vmatpush.msra.mxu0 %v636
    %672 = vmatpush.msra.mxu0 %v634
    %673 = vmatpush.msra.mxu0 %v632
    %674 = vmatpush.msra.mxu0 %v630
    %675 = vmatpush.msra.mxu0 %v628
    %676 = vmatpush.msra.mxu0 %v626
    %677 = vmatpush.msra.mxu0 %v624
    %678 = vmatpush.msra.mxu0 %v622
    %679 = vmatpush.msra.mxu0 %v620
    %680 = vmatpush.msra.mxu0 %v618
    %681 = vmatmul.f32.gmra.mxu0 %v601
    %v682 = vpop.f32.mrf.mxu0
    %v683 = vadd.f32 0.0, %v682
    %684 = vmatmul.f32.gmra.mxu0 %v602
    %v685 = vpop.f32.mrf.mxu0
    %v686 = vadd.f32 0.0, %v685
    %687 = vmatmul.f32.gmra.mxu0 %v603
    %v688 = vpop.f32.mrf.mxu0
    %v689 = vadd.f32 0.0, %v688
    %690 = vmatmul.f32.gmra.mxu0 %v604
    %v691 = vpop.f32.mrf.mxu0
    %v692 = vadd.f32 0.0, %v691
    %693 = vmatmul.f32.gmra.mxu0 %v605
    %v694 = vpop.f32.mrf.mxu0
    %v695 = vadd.f32 0.0, %v694
    %696 = vmatmul.f32.gmra.mxu0 %v606
    %v697 = vpop.f32.mrf.mxu0
    %v698 = vadd.f32 0.0, %v697
    %699 = vmatmul.f32.gmra.mxu0 %v607
    %v700 = vpop.f32.mrf.mxu0
    %v701 = vadd.f32 0.0, %v700
    %702 = vmatmul.f32.gmra.mxu0 %v608
    %v703 = vpop.f32.mrf.mxu0
    %v704 = vadd.f32 0.0, %v703
    %705 = vmatmul.f32.gmra.mxu0 %v609
    %v706 = vpop.f32.mrf.mxu0
    %v707 = vadd.f32 0.0, %v706
    %708 = vmatmul.f32.gmra.mxu0 %v610
    %v709 = vpop.f32.mrf.mxu0
    %v710 = vadd.f32 0.0, %v709
    %711 = vmatmul.f32.gmra.mxu0 %v611
    %v712 = vpop.f32.mrf.mxu0
    %v713 = vadd.f32 0.0, %v712
    %714 = vmatmul.f32.gmra.mxu0 %v612
    %v715 = vpop.f32.mrf.mxu0
    %v716 = vadd.f32 0.0, %v715
    %717 = vmatmul.f32.gmra.mxu0 %v613
    %v718 = vpop.f32.mrf.mxu0
    %v719 = vadd.f32 0.0, %v718
    %720 = vmatmul.f32.gmra.mxu0 %v614
    %v721 = vpop.f32.mrf.mxu0
    %v722 = vadd.f32 0.0, %v721
    %723 = vmatmul.f32.gmra.mxu0 %v615
    %v724 = vpop.f32.mrf.mxu0
    %v725 = vadd.f32 0.0, %v724
    %726 = vmatmul.f32.gmra.mxu0 %v616
    %v727 = vpop.f32.mrf.mxu0
    %v728 = vadd.f32 0.0, %v727
    %729 = vdwg.mxu0
    %v730 = vld [vmem:[#allocation3 + $0xb0] sm:$0xff]
    %v732 = vsel %vm391, %v683, 0
    %v735 = vsel %vm391, %v686, 0
    %v738 = vsel %vm391, %v689, 0
    %v741 = vsel %vm391, %v692, 0
    %743 = vmatpush.msra.mxu0 0.0
    %744 = vmatpush.msra.mxu0 0.0
    %745 = vmatpush.msra.mxu0 0.0
    %746 = vmatpush.msra.mxu0 0.0
    %747 = vmatpush.msra.mxu0 0.0
    %748 = vmatpush.msra.mxu0 0.0
    %749 = vmatpush.msra.mxu0 0.0
    %750 = vmatpush.msra.mxu0 0.0
    %751 = vmatpush.msra.mxu0 0.0
    %752 = vmatpush.msra.mxu0 0.0
    %753 = vmatpush.msra.mxu0 0.0
    %754 = vmatpush.msra.mxu0 0.0
    %755 = vmatpush.msra.mxu0 0.0
    %756 = vmatpush.msra.mxu0 0.0
    %757 = vmatpush.msra.mxu0 0.0
    %758 = vmatpush.msra.mxu0 %v730
    %759 = vmatmul.f32.gmra.mxu0 %v732
    %v760 = vpop.f32.mrf.mxu0
    %v761 = vadd.f32 0.0, %v760
    %762 = vmatmul.f32.gmra.mxu0 %v735
    %v763 = vpop.f32.mrf.mxu0
    %v764 = vadd.f32 0.0, %v763
    %765 = vmatmul.f32.gmra.mxu0 %v738
    %v766 = vpop.f32.mrf.mxu0
    %v767 = vadd.f32 0.0, %v766
    %768 = vmatmul.f32.gmra.mxu0 %v741
    %v769 = vpop.f32.mrf.mxu0
    %v770 = vadd.f32 0.0, %v769
    %771 = vdwg.mxu0
    %v772 = vperm.slane %v48, 0
    %v773 = vadd.f32 %v772, %v761
    %v774 = vadd.f32 %v772, %v764
    %v775 = vadd.f32 %v772, %v767
    %v776 = vadd.f32 %v772, %v770
    %v777 = vld [vmem:[#allocation3 + $0xb8] sm:$0xff]
    %v779 = vsel %vm391, %v695, 0
    %v782 = vsel %vm391, %v698, 0
    %v785 = vsel %vm391, %v701, 0
    %v788 = vsel %vm391, %v704, 0
    %790 = vmatpush.msra.mxu0 0.0
    %791 = vmatpush.msra.mxu0 0.0
    %792 = vmatpush.msra.mxu0 0.0
    %793 = vmatpush.msra.mxu0 0.0
    %794 = vmatpush.msra.mxu0 0.0
    %795 = vmatpush.msra.mxu0 0.0
    %796 = vmatpush.msra.mxu0 0.0
    %797 = vmatpush.msra.mxu0 0.0
    %798 = vmatpush.msra.mxu0 0.0
    %799 = vmatpush.msra.mxu0 0.0
    %800 = vmatpush.msra.mxu0 0.0
    %801 = vmatpush.msra.mxu0 0.0
    %802 = vmatpush.msra.mxu0 0.0
    %803 = vmatpush.msra.mxu0 0.0
    %804 = vmatpush.msra.mxu0 0.0
    %805 = vmatpush.msra.mxu0 %v777
    %806 = vmatmul.f32.gmra.mxu0 %v779
    %v807 = vpop.f32.mrf.mxu0
    %v808 = vadd.f32 0.0, %v807
    %809 = vmatmul.f32.gmra.mxu0 %v782
    %v810 = vpop.f32.mrf.mxu0
    %v811 = vadd.f32 0.0, %v810
    %812 = vmatmul.f32.gmra.mxu0 %v785
    %v813 = vpop.f32.mrf.mxu0
    %v814 = vadd.f32 0.0, %v813
    %815 = vmatmul.f32.gmra.mxu0 %v788
    %v816 = vpop.f32.mrf.mxu0
    %v817 = vadd.f32 0.0, %v816
    %818 = vdwg.mxu0
    %v819 = vadd.f32 %v773, %v808
    %v820 = vadd.f32 %v774, %v811
    %v821 = vadd.f32 %v775, %v814
    %v822 = vadd.f32 %v776, %v817
    %v823 = vld [vmem:[#allocation3 + $0xc0] sm:$0xff]
    %v825 = vsel %vm391, %v707, 0
    %v828 = vsel %vm391, %v710, 0
    %v831 = vsel %vm391, %v713, 0
    %v834 = vsel %vm391, %v716, 0
    %836 = vmatpush.msra.mxu0 0.0
    %837 = vmatpush.msra.mxu0 0.0
    %838 = vmatpush.msra.mxu0 0.0
    %839 = vmatpush.msra.mxu0 0.0
    %840 = vmatpush.msra.mxu0 0.0
    %841 = vmatpush.msra.mxu0 0.0
    %842 = vmatpush.msra.mxu0 0.0
    %843 = vmatpush.msra.mxu0 0.0
    %844 = vmatpush.msra.mxu0 0.0
    %845 = vmatpush.msra.mxu0 0.0
    %846 = vmatpush.msra.mxu0 0.0
    %847 = vmatpush.msra.mxu0 0.0
    %848 = vmatpush.msra.mxu0 0.0
    %849 = vmatpush.msra.mxu0 0.0
    %850 = vmatpush.msra.mxu0 0.0
    %851 = vmatpush.msra.mxu0 %v823
    %852 = vmatmul.f32.gmra.mxu0 %v825
    %v853 = vpop.f32.mrf.mxu0
    %v854 = vadd.f32 0.0, %v853
    %855 = vmatmul.f32.gmra.mxu0 %v828
    %v856 = vpop.f32.mrf.mxu0
    %v857 = vadd.f32 0.0, %v856
    %858 = vmatmul.f32.gmra.mxu0 %v831
    %v859 = vpop.f32.mrf.mxu0
    %v860 = vadd.f32 0.0, %v859
    %861 = vmatmul.f32.gmra.mxu0 %v834
    %v862 = vpop.f32.mrf.mxu0
    %v863 = vadd.f32 0.0, %v862
    %864 = vdwg.mxu0
    %v865 = vadd.f32 %v819, %v854
    %v866 = vadd.f32 %v820, %v857
    %v867 = vadd.f32 %v821, %v860
    %v868 = vadd.f32 %v822, %v863
    %v869 = vld [vmem:[#allocation3 + $0xc8] sm:$0xff]
    %v871 = vsel %vm391, %v719, 0
    %v874 = vsel %vm391, %v722, 0
    %v877 = vsel %vm391, %v725, 0
    %v880 = vsel %vm391, %v728, 0
    %882 = vmatpush.msra.mxu0 0.0
    %883 = vmatpush.msra.mxu0 0.0
    %884 = vmatpush.msra.mxu0 0.0
    %885 = vmatpush.msra.mxu0 0.0
    %886 = vmatpush.msra.mxu0 0.0
    %887 = vmatpush.msra.mxu0 0.0
    %888 = vmatpush.msra.mxu0 0.0
    %889 = vmatpush.msra.mxu0 0.0
    %890 = vmatpush.msra.mxu0 0.0
    %891 = vmatpush.msra.mxu0 0.0
    %892 = vmatpush.msra.mxu0 0.0
    %893 = vmatpush.msra.mxu0 0.0
    %894 = vmatpush.msra.mxu0 0.0
    %895 = vmatpush.msra.mxu0 0.0
    %896 = vmatpush.msra.mxu0 0.0
    %897 = vmatpush.msra.mxu0 %v869
    %898 = vmatmul.f32.gmra.mxu0 %v871
    %v899 = vpop.f32.mrf.mxu0
    %v900 = vadd.f32 0.0, %v899
    %901 = vmatmul.f32.gmra.mxu0 %v874
    %v902 = vpop.f32.mrf.mxu0
    %v903 = vadd.f32 0.0, %v902
    %904 = vmatmul.f32.gmra.mxu0 %v877
    %v905 = vpop.f32.mrf.mxu0
    %v906 = vadd.f32 0.0, %v905
    %907 = vmatmul.f32.gmra.mxu0 %v880
    %v908 = vpop.f32.mrf.mxu0
    %v909 = vadd.f32 0.0, %v908
    %910 = vdwg.mxu0
    %v911 = vadd.f32 %v865, %v900
    %v912 = vadd.f32 %v866, %v903
    %v913 = vadd.f32 %v867, %v906
    %v914 = vadd.f32 %v868, %v909
    %v915 = vadd.f32 %v27, %v911
    %v916 = vadd.f32 %v28, %v912
    %v917 = vadd.f32 %v29, %v913
    %v918 = vadd.f32 %v30, %v914
    %v919 = vld [vmem:[#allocation3 + $0xd0] sm:$0xff]
    %v920 = vld [vmem:[#allocation3 + $0xd8] sm:$0xff]
    %v921 = vld [vmem:[#allocation3 + $0xe0] sm:$0xff]
    %v922 = vld [vmem:[#allocation3 + $0xe8] sm:$0xff]
    %v923 = vld [vmem:[#allocation3 + $0xf0] sm:$0xff]
    %v924 = vld [vmem:[#allocation3 + $0xf8] sm:$0xff]
    %v925 = vld [vmem:[#allocation3 + $0x100] sm:$0xff]
    %v926 = vld [vmem:[#allocation3 + $0x108] sm:$0xff]
    %v927 = vld [vmem:[#allocation3 + $0x110] sm:$0xff]
    %v928 = vld [vmem:[#allocation3 + $0x118] sm:$0xff]
    %v929 = vld [vmem:[#allocation3 + $0x120] sm:$0xff]
    %v930 = vld [vmem:[#allocation3 + $0x128] sm:$0xff]
    %v931 = vsel %vm49, %v915, 0.0
    %932 = vadd.xlane.f32.xlu0 %v931
    %v933 = vpop.xlane.xlu0 %932
    %v934 = vsel %vm49, %v916, 0.0
    %935 = vadd.xlane.f32.xlu0 %v934
    %v936 = vpop.xlane.xlu0 %935
    %v937 = vsel %vm49, %v917, 0.0
    %938 = vadd.xlane.f32.xlu0 %v937
    %v939 = vpop.xlane.xlu0 %938
    %v940 = vsel %vm49, %v918, 0.0
    %941 = vadd.xlane.f32.xlu0 %v940
    %v942 = vpop.xlane.xlu0 %941
    %v943 = vmul.f32 %v933, %v68
    %v944 = vmul.f32 %v936, %v68
    %v945 = vmul.f32 %v939, %v68
    %v946 = vmul.f32 %v942, %v68
    %v947 = vsub.f32 %v915, %v943
    %v948 = vsub.f32 %v916, %v944
    %v949 = vsub.f32 %v917, %v945
    %v950 = vsub.f32 %v918, %v946
    %v951 = vmul.f32 %v947, %v947
    %v952 = vmul.f32 %v948, %v948
    %v953 = vmul.f32 %v949, %v949
    %v954 = vmul.f32 %v950, %v950
    %v955 = vsel %vm49, %v951, 0.0
    %956 = vadd.xlane.f32.xlu0 %v955
    %v957 = vpop.xlane.xlu0 %956
    %v958 = vsel %vm49, %v952, 0.0
    %959 = vadd.xlane.f32.xlu0 %v958
    %v960 = vpop.xlane.xlu0 %959
    %v961 = vsel %vm49, %v953, 0.0
    %962 = vadd.xlane.f32.xlu0 %v961
    %v963 = vpop.xlane.xlu0 %962
    %v964 = vsel %vm49, %v954, 0.0
    %965 = vadd.xlane.f32.xlu0 %v964
    %v966 = vpop.xlane.xlu0 %965
    %v967 = vmul.f32 %v957, %v68
    %v968 = vmul.f32 %v960, %v68
    %v969 = vmul.f32 %v963, %v68
    %v970 = vmul.f32 %v966, %v68
    %v971 = vadd.f32 %v967, 1e-12
    %v972 = vadd.f32 %v968, 1e-12
    %v973 = vadd.f32 %v969, 1e-12
    %v974 = vadd.f32 %v970, 1e-12
    %v975 = vrsqrt.pop %v971
    %v976 = vmul.f32 %v975, %v971
    %v977 = vmul.f32 %v976, %v975
    %v978 = vmul.f32 0.5, %v977
    %v979 = vsub.f32 1.5, %v978
    %v980 = vmul.f32 %v975, %v979
    %vm981 = vweird.f32 %v971
    %vm982 = vweird.f32 %v975
    %vm983 = vmor %vm981, %vm982
    %v984 = vsel %vm983, %v975, %v980
    %v985 = vrsqrt.pop %v972
    %v986 = vmul.f32 %v985, %v972
    %v987 = vmul.f32 %v986, %v985
    %v988 = vmul.f32 0.5, %v987
    %v989 = vsub.f32 1.5, %v988
    %v990 = vmul.f32 %v985, %v989
    %vm991 = vweird.f32 %v972
    %vm992 = vweird.f32 %v985
    %vm993 = vmor %vm991, %vm992
    %v994 = vsel %vm993, %v985, %v990
    %v995 = vrsqrt.pop %v973
    %v996 = vmul.f32 %v995, %v973
    %v997 = vmul.f32 %v996, %v995
    %v998 = vmul.f32 0.5, %v997
    %v999 = vsub.f32 1.5, %v998
    %v1000 = vmul.f32 %v995, %v999
    %vm1001 = vweird.f32 %v973
    %vm1002 = vweird.f32 %v995
    %vm1003 = vmor %vm1001, %vm1002
    %v1004 = vsel %vm1003, %v995, %v1000
    %v1005 = vrsqrt.pop %v974
    %v1006 = vmul.f32 %v1005, %v974
    %v1007 = vmul.f32 %v1006, %v1005
    %v1008 = vmul.f32 0.5, %v1007
    %v1009 = vsub.f32 1.5, %v1008
    %v1010 = vmul.f32 %v1005, %v1009
    %vm1011 = vweird.f32 %v974
    %vm1012 = vweird.f32 %v1005
    %vm1013 = vmor %vm1011, %vm1012
    %v1014 = vsel %vm1013, %v1005, %v1010
    %v1015 = vmul.f32 %v947, %v984
    %v1016 = vmul.f32 %v948, %v994
    %v1017 = vmul.f32 %v949, %v1004
    %v1018 = vmul.f32 %v950, %v1014
    %1019 = vrot.lane.b32.xlu0 %v145, 64
    %v1020 = vpop.permute.xlu0 %1019
    %v1022 = vmul.f32 %v1015, %v1020
    %v1023 = vmul.f32 %v1016, %v1020
    %v1024 = vmul.f32 %v1017, %v1020
    %v1025 = vmul.f32 %v1018, %v1020
    %1026 = vrot.lane.b32.xlu0 %v145, 32
    %v1027 = vpop.permute.xlu0 %1026
    %v1029 = vadd.f32 %v1022, %v1027
    %v1030 = vadd.f32 %v1023, %v1027
    %v1031 = vadd.f32 %v1024, %v1027
    %v1032 = vadd.f32 %v1025, %v1027
    %1034 = vrot.lane.b32.xlu0 %v772, 64
    %v1035 = vpop.permute.xlu0 %1034
    %v1038 = vsel %vm49, %v1029, 0
    %v1041 = vsel %vm49, %v1030, 0
    %v1044 = vsel %vm49, %v1031, 0
    %v1047 = vsel %vm49, %v1032, 0
    %1049 = vmatpush.msra.mxu0 0.0
    %1050 = vmatpush.msra.mxu0 0.0
    %1051 = vmatpush.msra.mxu0 0.0
    %1052 = vmatpush.msra.mxu0 0.0
    %1053 = vmatpush.msra.mxu0 0.0
    %1054 = vmatpush.msra.mxu0 0.0
    %1055 = vmatpush.msra.mxu0 0.0
    %1056 = vmatpush.msra.mxu0 0.0
    %1057 = vmatpush.msra.mxu0 0.0
    %1058 = vmatpush.msra.mxu0 0.0
    %1059 = vmatpush.msra.mxu0 0.0
    %1060 = vmatpush.msra.mxu0 0.0
    %1061 = vmatpush.msra.mxu0 %v922
    %1062 = vmatpush.msra.mxu0 %v921
    %1063 = vmatpush.msra.mxu0 %v920
    %1064 = vmatpush.msra.mxu0 %v919
    %1065 = vmatmul.f32.gmra.mxu0 %v1038
    %v1066 = vpop.f32.mrf.mxu0
    %v1067 = vadd.f32 %v1035, %v1066
    %1068 = vmatmul.f32.gmra.mxu0 %v1041
    %v1069 = vpop.f32.mrf.mxu0
    %v1070 = vadd.f32 %v1035, %v1069
    %1071 = vmatmul.f32.gmra.mxu0 %v1044
    %v1072 = vpop.f32.mrf.mxu0
    %v1073 = vadd.f32 %v1035, %v1072
    %1074 = vmatmul.f32.gmra.mxu0 %v1047
    %v1075 = vpop.f32.mrf.mxu0
    %v1076 = vadd.f32 %v1035, %v1075
    %1077 = vdwg.mxu0
    %v1078 = vmul.f32 %v1067, 0.5
    %v1079 = vmul.f32 %v1070, 0.5
    %v1080 = vmul.f32 %v1073, 0.5
    %v1081 = vmul.f32 %v1076, 0.5
    %v1082 = vmul.f32 %v1067, 0.044715
    %v1083 = vmul.f32 %v1070, 0.044715
    %v1084 = vmul.f32 %v1073, 0.044715
    %v1085 = vmul.f32 %v1076, 0.044715
    %v1086 = vmul.f32 %v1082, %v1067
    %v1087 = vmul.f32 %v1083, %v1070
    %v1088 = vmul.f32 %v1084, %v1073
    %v1089 = vmul.f32 %v1085, %v1076
    %v1090 = vmul.f32 %v1086, %v1067
    %v1091 = vmul.f32 %v1087, %v1070
    %v1092 = vmul.f32 %v1088, %v1073
    %v1093 = vmul.f32 %v1089, %v1076
    %v1094 = vadd.f32 %v1067, %v1090
    %v1095 = vadd.f32 %v1070, %v1091
    %v1096 = vadd.f32 %v1073, %v1092
    %v1097 = vadd.f32 %v1076, %v1093
    %v1098 = vmul.f32 %v1094, 0.7978846
    %v1099 = vmul.f32 %v1095, 0.7978846
    %v1100 = vmul.f32 %v1096, 0.7978846
    %v1101 = vmul.f32 %v1097, 0.7978846
    %v1102 = vtanh.pop %v1098
    %v1103 = vtanh.pop %v1099
    %v1104 = vtanh.pop %v1100
    %v1105 = vtanh.pop %v1101
    %v1106 = vadd.f32 %v1102, 1.0
    %v1107 = vadd.f32 %v1103, 1.0
    %v1108 = vadd.f32 %v1104, 1.0
    %v1109 = vadd.f32 %v1105, 1.0
    %v1110 = vmul.f32 %v1078, %v1106
    %v1111 = vmul.f32 %v1079, %v1107
    %v1112 = vmul.f32 %v1080, %v1108
    %v1113 = vmul.f32 %v1081, %v1109
    %vm1114 = vcmask 523264
    %v1116 = vsel %vm1114, %v1110, 0
    %v1119 = vsel %vm1114, %v1111, 0
    %v1122 = vsel %vm1114, %v1112, 0
    %v1125 = vsel %vm1114, %v1113, 0
    %1127 = vmatpush.msra.mxu0 0.0
    %1128 = vmatpush.msra.mxu0 0.0
    %1129 = vmatpush.msra.mxu0 0.0
    %1130 = vmatpush.msra.mxu0 0.0
    %1131 = vmatpush.msra.mxu0 0.0
    %1132 = vmatpush.msra.mxu0 0.0
    %1133 = vmatpush.msra.mxu0 0.0
    %1134 = vmatpush.msra.mxu0 0.0
    %1135 = vmatpush.msra.mxu0 %v930
    %1136 = vmatpush.msra.mxu0 %v929
    %1137 = vmatpush.msra.mxu0 %v928
    %1138 = vmatpush.msra.mxu0 %v927
    %1139 = vmatpush.msra.mxu0 %v926
    %1140 = vmatpush.msra.mxu0 %v925
    %1141 = vmatpush.msra.mxu0 %v924
    %1142 = vmatpush.msra.mxu0 %v923
    %1143 = vmatmul.f32.gmra.mxu0 %v1116
    %v1144 = vpop.f32.mrf.mxu0
    %v1145 = vadd.f32 0.0, %v1144
    %1146 = vmatmul.f32.gmra.mxu0 %v1119
    %v1147 = vpop.f32.mrf.mxu0
    %v1148 = vadd.f32 0.0, %v1147
    %1149 = vmatmul.f32.gmra.mxu0 %v1122
    %v1150 = vpop.f32.mrf.mxu0
    %v1151 = vadd.f32 0.0, %v1150
    %1152 = vmatmul.f32.gmra.mxu0 %v1125
    %v1153 = vpop.f32.mrf.mxu0
    %v1154 = vadd.f32 0.0, %v1153
    %1155 = vdwg.mxu0
    %v1156 = vadd.f32 %v915, %v1145
    %v1157 = vadd.f32 %v916, %v1148
    %v1158 = vadd.f32 %v917, %v1151
    %v1159 = vadd.f32 %v918, %v1154
    %1160 = vrot.lane.b32.xlu0 %v772, 96
    %v1161 = vpop.permute.xlu0 %1160
    %v1163 = vadd.f32 %v1156, %v1161
    %v1164 = vadd.f32 %v1157, %v1161
    %v1165 = vadd.f32 %v1158, %v1161
    %v1166 = vadd.f32 %v1159, %v1161
    %v1167 = vld [vmem:[#allocation3 + $0x130] sm:$0x1]
    %v1168 = vld [vmem:[#allocation3 + $0x138] sm:$0x1]
    %v1169 = vsel %vm49, %v1163, 0.0
    %1170 = vadd.xlane.f32.xlu0 %v1169
    %v1171 = vpop.xlane.xlu0 %1170
    %v1172 = vsel %vm49, %v1164, 0.0
    %1173 = vadd.xlane.f32.xlu0 %v1172
    %v1174 = vpop.xlane.xlu0 %1173
    %v1175 = vsel %vm49, %v1165, 0.0
    %1176 = vadd.xlane.f32.xlu0 %v1175
    %v1177 = vpop.xlane.xlu0 %1176
    %v1178 = vsel %vm49, %v1166, 0.0
    %1179 = vadd.xlane.f32.xlu0 %v1178
    %v1180 = vpop.xlane.xlu0 %1179
    %v1181 = vmul.f32 %v1171, %v68
    %v1182 = vmul.f32 %v1174, %v68
    %v1183 = vmul.f32 %v1177, %v68
    %v1184 = vmul.f32 %v1180, %v68
    %v1185 = vsub.f32 %v1163, %v1181
    %v1186 = vsub.f32 %v1164, %v1182
    %v1187 = vsub.f32 %v1165, %v1183
    %v1188 = vsub.f32 %v1166, %v1184
    %v1189 = vmul.f32 %v1185, %v1185
    %v1190 = vmul.f32 %v1186, %v1186
    %v1191 = vmul.f32 %v1187, %v1187
    %v1192 = vmul.f32 %v1188, %v1188
    %v1193 = vsel %vm49, %v1189, 0.0
    %1194 = vadd.xlane.f32.xlu0 %v1193
    %v1195 = vpop.xlane.xlu0 %1194
    %v1196 = vsel %vm49, %v1190, 0.0
    %1197 = vadd.xlane.f32.xlu0 %v1196
    %v1198 = vpop.xlane.xlu0 %1197
    %v1199 = vsel %vm49, %v1191, 0.0
    %1200 = vadd.xlane.f32.xlu0 %v1199
    %v1201 = vpop.xlane.xlu0 %1200
    %v1202 = vsel %vm49, %v1192, 0.0
    %1203 = vadd.xlane.f32.xlu0 %v1202
    %v1204 = vpop.xlane.xlu0 %1203
    %v1205 = vmul.f32 %v1195, %v68
    %v1206 = vmul.f32 %v1198, %v68
    %v1207 = vmul.f32 %v1201, %v68
    %v1208 = vmul.f32 %v1204, %v68
    %v1209 = vadd.f32 %v1205, 1e-12
    %v1210 = vadd.f32 %v1206, 1e-12
    %v1211 = vadd.f32 %v1207, 1e-12
    %v1212 = vadd.f32 %v1208, 1e-12
    %v1213 = vrsqrt.pop %v1209
    %v1214 = vmul.f32 %v1213, %v1209
    %v1215 = vmul.f32 %v1214, %v1213
    %v1216 = vmul.f32 0.5, %v1215
    %v1217 = vsub.f32 1.5, %v1216
    %v1218 = vmul.f32 %v1213, %v1217
    %vm1219 = vweird.f32 %v1209
    %vm1220 = vweird.f32 %v1213
    %vm1221 = vmor %vm1219, %vm1220
    %v1222 = vsel %vm1221, %v1213, %v1218
    %v1223 = vrsqrt.pop %v1210
    %v1224 = vmul.f32 %v1223, %v1210
    %v1225 = vmul.f32 %v1224, %v1223
    %v1226 = vmul.f32 0.5, %v1225
    %v1227 = vsub.f32 1.5, %v1226
    %v1228 = vmul.f32 %v1223, %v1227
    %vm1229 = vweird.f32 %v1210
    %vm1230 = vweird.f32 %v1223
    %vm1231 = vmor %vm1229, %vm1230
    %v1232 = vsel %vm1231, %v1223, %v1228
    %v1233 = vrsqrt.pop %v1211
    %v1234 = vmul.f32 %v1233, %v1211
    %v1235 = vmul.f32 %v1234, %v1233
    %v1236 = vmul.f32 0.5, %v1235
    %v1237 = vsub.f32 1.5, %v1236
    %v1238 = vmul.f32 %v1233, %v1237
    %vm1239 = vweird.f32 %v1211
    %vm1240 = vweird.f32 %v1233
    %vm1241 = vmor %vm1239, %vm1240
    %v1242 = vsel %vm1241, %v1233, %v1238
    %v1243 = vrsqrt.pop %v1212
    %v1244 = vmul.f32 %v1243, %v1212
    %v1245 = vmul.f32 %v1244, %v1243
    %v1246 = vmul.f32 0.5, %v1245
    %v1247 = vsub.f32 1.5, %v1246
    %v1248 = vmul.f32 %v1243, %v1247
    %vm1249 = vweird.f32 %v1212
    %vm1250 = vweird.f32 %v1243
    %vm1251 = vmor %vm1249, %vm1250
    %v1252 = vsel %vm1251, %v1243, %v1248
    %v1253 = vmul.f32 %v1185, %v1222
    %v1254 = vmul.f32 %v1186, %v1232
    %v1255 = vmul.f32 %v1187, %v1242
    %v1256 = vmul.f32 %v1188, %v1252
    %v1257 = vperm.slane %v1167, 0
    %v1258 = vmul.f32 %v1253, %v1257
    %v1259 = vmul.f32 %v1254, %v1257
    %v1260 = vmul.f32 %v1255, %v1257
    %v1261 = vmul.f32 %v1256, %v1257
    %1263 = vrot.lane.b32.xlu0 %v1257, 96
    %v1264 = vpop.permute.xlu0 %1263
    %v1266 = vadd.f32 %v1258, %v1264
    %v1267 = vadd.f32 %v1259, %v1264
    %v1268 = vadd.f32 %v1260, %v1264
    %v1269 = vadd.f32 %v1261, %v1264
    %v1270 = vld [vmem:[#allocation3 + $0x160] sm:$0xff]
    %v1271 = vld [vmem:[#allocation3 + $0x168] sm:$0xff]
    %v1272 = vld [vmem:[#allocation3 + $0x170] sm:$0xff]
    %v1273 = vld [vmem:[#allocation3 + $0x178] sm:$0xff]
    %v1274 = vld [vmem:[#allocation3 + $0x140] sm:$0x1]
    %v1275 = vperm.slane %v1274, 0
    %v1277 = vsel %vm49, %v1266, 0
    %v1280 = vsel %vm49, %v1267, 0
    %v1283 = vsel %vm49, %v1268, 0
    %v1286 = vsel %vm49, %v1269, 0
    %1288 = vmatpush.msra.mxu0 0.0
    %1289 = vmatpush.msra.mxu0 0.0
    %1290 = vmatpush.msra.mxu0 0.0
    %1291 = vmatpush.msra.mxu0 0.0
    %1292 = vmatpush.msra.mxu0 0.0
    %1293 = vmatpush.msra.mxu0 0.0
    %1294 = vmatpush.msra.mxu0 0.0
    %1295 = vmatpush.msra.mxu0 0.0
    %1296 = vmatpush.msra.mxu0 0.0
    %1297 = vmatpush.msra.mxu0 0.0
    %1298 = vmatpush.msra.mxu0 0.0
    %1299 = vmatpush.msra.mxu0 0.0
    %1300 = vmatpush.msra.mxu0 %v1273
    %1301 = vmatpush.msra.mxu0 %v1272
    %1302 = vmatpush.msra.mxu0 %v1271
    %1303 = vmatpush.msra.mxu0 %v1270
    %1304 = vmatmul.f32.gmra.mxu0 %v1277
    %v1305 = vpop.f32.mrf.mxu0
    %v1306 = vadd.f32 %v1275, %v1305
    %1307 = vmatmul.f32.gmra.mxu0 %v1280
    %v1308 = vpop.f32.mrf.mxu0
    %v1309 = vadd.f32 %v1275, %v1308
    %1310 = vmatmul.f32.gmra.mxu0 %v1283
    %v1311 = vpop.f32.mrf.mxu0
    %v1312 = vadd.f32 %v1275, %v1311
    %1313 = vmatmul.f32.gmra.mxu0 %v1286
    %v1314 = vpop.f32.mrf.mxu0
    %v1315 = vadd.f32 %v1275, %v1314
    %1316 = vdwg.mxu0
    %1317 = vst.msk [vmem:[#allocation2] sm:$0xff] %vm205, %v1306
    %1318 = vst.msk [vmem:[#allocation2 + $0x8] sm:$0xff] %vm205, %v1309
    %1319 = vst.msk [vmem:[#allocation2 + $0x10] sm:$0xff] %vm205, %v1312
    %1320 = vst.msk [vmem:[#allocation2 + $0x18] sm:$0xff] %vm205, %v1315
    %v1321 = vld [vmem:[#allocation3 + $0x180] sm:$0xff]
    %v1322 = vld [vmem:[#allocation3 + $0x188] sm:$0xff]
    %v1323 = vld [vmem:[#allocation3 + $0x190] sm:$0xff]
    %v1324 = vld [vmem:[#allocation3 + $0x198] sm:$0xff]
    %v1325 = vld [vmem:[#allocation3 + $0x148] sm:$0x1]
    %v1326 = vperm.slane %v1325, 0
    %1327 = vmatpush.msra.mxu0 0.0
    %1328 = vmatpush.msra.mxu0 0.0
    %1329 = vmatpush.msra.mxu0 0.0
    %1330 = vmatpush.msra.mxu0 0.0
    %1331 = vmatpush.msra.mxu0 0.0
    %1332 = vmatpush.msra.mxu0 0.0
    %1333 = vmatpush.msra.mxu0 0.0
    %1334 = vmatpush.msra.mxu0 0.0
    %1335 = vmatpush.msra.mxu0 0.0
    %1336 = vmatpush.msra.mxu0 0.0
    %1337 = vmatpush.msra.mxu0 0.0
    %1338 = vmatpush.msra.mxu0 0.0
    %1339 = vmatpush.msra.mxu0 %v1324
    %1340 = vmatpush.msra.mxu0 %v1323
    %1341 = vmatpush.msra.mxu0 %v1322
    %1342 = vmatpush.msra.mxu0 %v1321
    %1343 = vmatmul.f32.gmra.mxu0 %v1277
    %v1344 = vpop.f32.mrf.mxu0
    %v1345 = vadd.f32 %v1326, %v1344
    %1346 = vmatmul.f32.gmra.mxu0 %v1280
    %v1347 = vpop.f32.mrf.mxu0
    %v1348 = vadd.f32 %v1326, %v1347
    %1349 = vmatmul.f32.gmra.mxu0 %v1283
    %v1350 = vpop.f32.mrf.mxu0
    %v1351 = vadd.f32 %v1326, %v1350
    %1352 = vmatmul.f32.gmra.mxu0 %v1286
    %v1353 = vpop.f32.mrf.mxu0
    %v1354 = vadd.f32 %v1326, %v1353
    %1355 = vdwg.mxu0
    %1356 = vst.msk [vmem:[#allocation2 + $0x20] sm:$0xff] %vm205, %v1345
    %1357 = vst.msk [vmem:[#allocation2 + $0x28] sm:$0xff] %vm205, %v1348
    %1358 = vst.msk [vmem:[#allocation2 + $0x30] sm:$0xff] %vm205, %v1351
    %1359 = vst.msk [vmem:[#allocation2 + $0x38] sm:$0xff] %vm205, %v1354
    %v1360 = vld [vmem:[#allocation3 + $0x1a0] sm:$0xff]
    %v1361 = vld [vmem:[#allocation3 + $0x1a8] sm:$0xff]
    %v1362 = vld [vmem:[#allocation3 + $0x1b0] sm:$0xff]
    %v1363 = vld [vmem:[#allocation3 + $0x1b8] sm:$0xff]
    %v1364 = vld [vmem:[#allocation3 + $0x150] sm:$0x1]
    %v1365 = vperm.slane %v1364, 0
    %1366 = vmatpush.msra.mxu0 0.0
    %1367 = vmatpush.msra.mxu0 0.0
    %1368 = vmatpush.msra.mxu0 0.0
    %1369 = vmatpush.msra.mxu0 0.0
    %1370 = vmatpush.msra.mxu0 0.0
    %1371 = vmatpush.msra.mxu0 0.0
    %1372 = vmatpush.msra.mxu0 0.0
    %1373 = vmatpush.msra.mxu0 0.0
    %1374 = vmatpush.msra.mxu0 0.0
    %1375 = vmatpush.msra.mxu0 0.0
    %1376 = vmatpush.msra.mxu0 0.0
    %1377 = vmatpush.msra.mxu0 0.0
    %1378 = vmatpush.msra.mxu0 %v1363
    %1379 = vmatpush.msra.mxu0 %v1362
    %1380 = vmatpush.msra.mxu0 %v1361
    %1381 = vmatpush.msra.mxu0 %v1360
    %1382 = vmatmul.f32.gmra.mxu0 %v1277
    %v1383 = vpop.f32.mrf.mxu0
    %v1384 = vadd.f32 %v1365, %v1383
    %1385 = vmatmul.f32.gmra.mxu0 %v1280
    %v1386 = vpop.f32.mrf.mxu0
    %v1387 = vadd.f32 %v1365, %v1386
    %1388 = vmatmul.f32.gmra.mxu0 %v1283
    %v1389 = vpop.f32.mrf.mxu0
    %v1390 = vadd.f32 %v1365, %v1389
    %1391 = vmatmul.f32.gmra.mxu0 %v1286
    %v1392 = vpop.f32.mrf.mxu0
    %v1393 = vadd.f32 %v1365, %v1392
    %1394 = vdwg.mxu0
    %1395 = vst.msk [vmem:[#allocation2 + $0x40] sm:$0xff] %vm205, %v1384
    %1396 = vst.msk [vmem:[#allocation2 + $0x48] sm:$0xff] %vm205, %v1387
    %1397 = vst.msk [vmem:[#allocation2 + $0x50] sm:$0xff] %vm205, %v1390
    %1398 = vst.msk [vmem:[#allocation2 + $0x58] sm:$0xff] %vm205, %v1393
    %v1399 = vld [vmem:[#allocation3 + $0x1c0] sm:$0xff]
    %v1400 = vld [vmem:[#allocation3 + $0x1c8] sm:$0xff]
    %v1401 = vld [vmem:[#allocation3 + $0x1d0] sm:$0xff]
    %v1402 = vld [vmem:[#allocation3 + $0x1d8] sm:$0xff]
    %v1403 = vld [vmem:[#allocation3 + $0x158] sm:$0x1]
    %v1404 = vperm.slane %v1403, 0
    %1405 = vmatpush.msra.mxu0 0.0
    %1406 = vmatpush.msra.mxu0 0.0
    %1407 = vmatpush.msra.mxu0 0.0
    %1408 = vmatpush.msra.mxu0 0.0
    %1409 = vmatpush.msra.mxu0 0.0
    %1410 = vmatpush.msra.mxu0 0.0
    %1411 = vmatpush.msra.mxu0 0.0
    %1412 = vmatpush.msra.mxu0 0.0
    %1413 = vmatpush.msra.mxu0 0.0
    %1414 = vmatpush.msra.mxu0 0.0
    %1415 = vmatpush.msra.mxu0 0.0
    %1416 = vmatpush.msra.mxu0 0.0
    %1417 = vmatpush.msra.mxu0 %v1402
    %1418 = vmatpush.msra.mxu0 %v1401
    %1419 = vmatpush.msra.mxu0 %v1400
    %1420 = vmatpush.msra.mxu0 %v1399
    %1421 = vmatmul.f32.gmra.mxu0 %v1277
    %v1422 = vpop.f32.mrf.mxu0
    %v1423 = vadd.f32 %v1404, %v1422
    %1424 = vmatmul.f32.gmra.mxu0 %v1280
    %v1425 = vpop.f32.mrf.mxu0
    %v1426 = vadd.f32 %v1404, %v1425
    %1427 = vmatmul.f32.gmra.mxu0 %v1283
    %v1428 = vpop.f32.mrf.mxu0
    %v1429 = vadd.f32 %v1404, %v1428
    %1430 = vmatmul.f32.gmra.mxu0 %v1286
    %v1431 = vpop.f32.mrf.mxu0
    %v1432 = vadd.f32 %v1404, %v1431
    %1433 = vdwg.mxu0
    %1434 = vst.msk [vmem:[#allocation2 + $0x60] sm:$0xff] %vm205, %v1423
    %1435 = vst.msk [vmem:[#allocation2 + $0x68] sm:$0xff] %vm205, %v1426
    %1436 = vst.msk [vmem:[#allocation2 + $0x70] sm:$0xff] %vm205, %v1429
    %1437 = vst.msk [vmem:[#allocation2 + $0x78] sm:$0xff] %vm205, %v1432
    %v1438 = vld [vmem:[#allocation2] sm:$0xff]
    %v1439 = vld [vmem:[#allocation2 + $0x8] sm:$0xff]
    %v1440 = vld [vmem:[#allocation2 + $0x10] sm:$0xff]
    %v1441 = vld [vmem:[#allocation2 + $0x18] sm:$0xff]
    %v1442 = vld [vmem:[#allocation2 + $0x20] sm:$0xff]
    %v1443 = vld [vmem:[#allocation2 + $0x28] sm:$0xff]
    %v1444 = vld [vmem:[#allocation2 + $0x30] sm:$0xff]
    %v1445 = vld [vmem:[#allocation2 + $0x38] sm:$0xff]
    %v1446 = vld [vmem:[#allocation2 + $0x40] sm:$0xff]
    %v1447 = vld [vmem:[#allocation2 + $0x48] sm:$0xff]
    %v1448 = vld [vmem:[#allocation2 + $0x50] sm:$0xff]
    %v1449 = vld [vmem:[#allocation2 + $0x58] sm:$0xff]
    %v1450 = vld [vmem:[#allocation2 + $0x60] sm:$0xff]
    %v1451 = vld [vmem:[#allocation2 + $0x68] sm:$0xff]
    %v1452 = vld [vmem:[#allocation2 + $0x70] sm:$0xff]
    %v1453 = vld [vmem:[#allocation2 + $0x78] sm:$0xff]
    %1470 = vrot.lane.b32.xlu0 %v1438, 120
    %v1471 = vpop.permute.xlu0 %1470
    %1472 = vrot.lane.b32.xlu0 %v1439, 120
    %v1473 = vpop.permute.xlu0 %1472
    %1474 = vrot.lane.b32.xlu0 %v1440, 120
    %v1475 = vpop.permute.xlu0 %1474
    %1476 = vrot.lane.b32.xlu0 %v1441, 120
    %v1477 = vpop.permute.xlu0 %1476
    %1478 = vrot.lane.b32.xlu0 %v1442, 120
    %v1479 = vpop.permute.xlu0 %1478
    %1480 = vrot.lane.b32.xlu0 %v1443, 120
    %v1481 = vpop.permute.xlu0 %1480
    %1482 = vrot.lane.b32.xlu0 %v1444, 120
    %v1483 = vpop.permute.xlu0 %1482
    %1484 = vrot.lane.b32.xlu0 %v1445, 120
    %v1485 = vpop.permute.xlu0 %1484
    %1486 = vrot.lane.b32.xlu0 %v1446, 120
    %v1487 = vpop.permute.xlu0 %1486
    %1488 = vrot.lane.b32.xlu0 %v1447, 120
    %v1489 = vpop.permute.xlu0 %1488
    %1490 = vrot.lane.b32.xlu0 %v1448, 120
    %v1491 = vpop.permute.xlu0 %1490
    %1492 = vrot.lane.b32.xlu0 %v1449, 120
    %v1493 = vpop.permute.xlu0 %1492
    %1494 = vrot.lane.b32.xlu0 %v1450, 120
    %v1495 = vpop.permute.xlu0 %1494
    %1496 = vrot.lane.b32.xlu0 %v1451, 120
    %v1497 = vpop.permute.xlu0 %1496
    %1498 = vrot.lane.b32.xlu0 %v1452, 120
    %v1499 = vpop.permute.xlu0 %1498
    %1500 = vrot.lane.b32.xlu0 %v1453, 120
    %v1501 = vpop.permute.xlu0 %1500
    %v1502 = vsel %vm391, %v1438, 0
    %v1504 = vsel %vm391, %v1439, 0
    %v1506 = vsel %vm391, %v1440, 0
    %v1508 = vsel %vm391, %v1441, 0
    %v1510 = vsel %vm391, %v1442, 0
    %v1512 = vsel %vm391, %v1443, 0
    %v1514 = vsel %vm391, %v1444, 0
    %v1516 = vsel %vm391, %v1445, 0
    %v1518 = vsel %vm391, %v1446, 0
    %v1520 = vsel %vm391, %v1447, 0
    %v1522 = vsel %vm391, %v1448, 0
    %v1524 = vsel %vm391, %v1449, 0
    %v1526 = vsel %vm391, %v1450, 0
    %v1528 = vsel %vm391, %v1451, 0
    %v1530 = vsel %vm391, %v1452, 0
    %v1532 = vsel %vm391, %v1453, 0
    %v1534 = vsel %vm391, %v1471, 0
    %v1536 = vsel %vm391, %v1473, 0
    %v1538 = vsel %vm391, %v1475, 0
    %v1540 = vsel %vm391, %v1477, 0
    %v1542 = vsel %vm391, %v1479, 0
    %v1544 = vsel %vm391, %v1481, 0
    %v1546 = vsel %vm391, %v1483, 0
    %v1548 = vsel %vm391, %v1485, 0
    %v1550 = vsel %vm391, %v1487, 0
    %v1552 = vsel %vm391, %v1489, 0
    %v1554 = vsel %vm391, %v1491, 0
    %v1556 = vsel %vm391, %v1493, 0
    %v1558 = vsel %vm391, %v1495, 0
    %v1560 = vsel %vm391, %v1497, 0
    %v1562 = vsel %vm391, %v1499, 0
    %v1564 = vsel %vm391, %v1501, 0
    %1566 = vmatpush.xpose.msra.mxu0 %v1564
    %1567 = vmatpush.xpose.msra.mxu0 %v1562
    %1568 = vmatpush.xpose.msra.mxu0 %v1560
    %1569 = vmatpush.xpose.msra.mxu0 %v1558
    %1570 = vmatpush.xpose.msra.mxu0 %v1556
    %1571 = vmatpush.xpose.msra.mxu0 %v1554
    %1572 = vmatpush.xpose.msra.mxu0 %v1552
    %1573 = vmatpush.xpose.msra.mxu0 %v1550
    %1574 = vmatpush.xpose.msra.mxu0 %v1548
    %1575 = vmatpush.xpose.msra.mxu0 %v1546
    %1576 = vmatpush.xpose.msra.mxu0 %v1544
    %1577 = vmatpush.xpose.msra.mxu0 %v1542
    %1578 = vmatpush.xpose.msra.mxu0 %v1540
    %1579 = vmatpush.xpose.msra.mxu0 %v1538
    %1580 = vmatpush.xpose.msra.mxu0 %v1536
    %1581 = vmatpush.xpose.msra.mxu0 %v1534
    %1582 = vmatmul.f32.gmra.mxu0 %v1502
    %v1583 = vpop.f32.mrf.mxu0
    %v1584 = vadd.f32 %v31, %v1583
    %1585 = vmatmul.f32.gmra.mxu0 %v1504
    %v1586 = vpop.f32.mrf.mxu0
    %v1587 = vadd.f32 %v32, %v1586
    %1588 = vmatmul.f32.gmra.mxu0 %v1506
    %v1589 = vpop.f32.mrf.mxu0
    %v1590 = vadd.f32 %v33, %v1589
    %1591 = vmatmul.f32.gmra.mxu0 %v1508
    %v1592 = vpop.f32.mrf.mxu0
    %v1593 = vadd.f32 %v34, %v1592
    %1594 = vmatmul.f32.gmra.mxu0 %v1510
    %v1595 = vpop.f32.mrf.mxu0
    %v1596 = vadd.f32 %v35, %v1595
    %1597 = vmatmul.f32.gmra.mxu0 %v1512
    %v1598 = vpop.f32.mrf.mxu0
    %v1599 = vadd.f32 %v36, %v1598
    %1600 = vmatmul.f32.gmra.mxu0 %v1514
    %v1601 = vpop.f32.mrf.mxu0
    %v1602 = vadd.f32 %v37, %v1601
    %1603 = vmatmul.f32.gmra.mxu0 %v1516
    %v1604 = vpop.f32.mrf.mxu0
    %v1605 = vadd.f32 %v38, %v1604
    %1606 = vmatmul.f32.gmra.mxu0 %v1518
    %v1607 = vpop.f32.mrf.mxu0
    %v1608 = vadd.f32 %v39, %v1607
    %1609 = vmatmul.f32.gmra.mxu0 %v1520
    %v1610 = vpop.f32.mrf.mxu0
    %v1611 = vadd.f32 %v40, %v1610
    %1612 = vmatmul.f32.gmra.mxu0 %v1522
    %v1613 = vpop.f32.mrf.mxu0
    %v1614 = vadd.f32 %v41, %v1613
    %1615 = vmatmul.f32.gmra.mxu0 %v1524
    %v1616 = vpop.f32.mrf.mxu0
    %v1617 = vadd.f32 %v42, %v1616
    %1618 = vmatmul.f32.gmra.mxu0 %v1526
    %v1619 = vpop.f32.mrf.mxu0
    %v1620 = vadd.f32 %v43, %v1619
    %1621 = vmatmul.f32.gmra.mxu0 %v1528
    %v1622 = vpop.f32.mrf.mxu0
    %v1623 = vadd.f32 %v44, %v1622
    %1624 = vmatmul.f32.gmra.mxu0 %v1530
    %v1625 = vpop.f32.mrf.mxu0
    %v1626 = vadd.f32 %v45, %v1625
    %1627 = vmatmul.f32.gmra.mxu0 %v1532
    %v1628 = vpop.f32.mrf.mxu0
    %v1629 = vadd.f32 %v46, %v1628
    %1630 = vdwg.mxu0
    %v1631 = vmul.f32 %v1584, 1.442695
    %v1632 = vpow.pop %v1631
    %v1633 = vmul.f32 %v1587, 1.442695
    %v1634 = vpow.pop %v1633
    %v1635 = vmul.f32 %v1590, 1.442695
    %v1636 = vpow.pop %v1635
    %v1637 = vmul.f32 %v1593, 1.442695
    %v1638 = vpow.pop %v1637
    %v1639 = vmul.f32 %v1596, 1.442695
    %v1640 = vpow.pop %v1639
    %v1641 = vmul.f32 %v1599, 1.442695
    %v1642 = vpow.pop %v1641
    %v1643 = vmul.f32 %v1602, 1.442695
    %v1644 = vpow.pop %v1643
    %v1645 = vmul.f32 %v1605, 1.442695
    %v1646 = vpow.pop %v1645
    %v1647 = vmul.f32 %v1608, 1.442695
    %v1648 = vpow.pop %v1647
    %v1649 = vmul.f32 %v1611, 1.442695
    %v1650 = vpow.pop %v1649
    %v1651 = vmul.f32 %v1614, 1.442695
    %v1652 = vpow.pop %v1651
    %v1653 = vmul.f32 %v1617, 1.442695
    %v1654 = vpow.pop %v1653
    %v1655 = vmul.f32 %v1620, 1.442695
    %v1656 = vpow.pop %v1655
    %v1657 = vmul.f32 %v1623, 1.442695
    %v1658 = vpow.pop %v1657
    %v1659 = vmul.f32 %v1626, 1.442695
    %v1660 = vpow.pop %v1659
    %v1661 = vmul.f32 %v1629, 1.442695
    %v1662 = vpow.pop %v1661
    %1663 = vadd.xlane.f32.xlu0 %v1632
    %v1664 = vpop.xlane.xlu0 %1663
    %1665 = vadd.xlane.f32.xlu0 %v1634
    %v1666 = vpop.xlane.xlu0 %1665
    %1667 = vadd.xlane.f32.xlu0 %v1636
    %v1668 = vpop.xlane.xlu0 %1667
    %1669 = vadd.xlane.f32.xlu0 %v1638
    %v1670 = vpop.xlane.xlu0 %1669
    %1671 = vadd.xlane.f32.xlu0 %v1640
    %v1672 = vpop.xlane.xlu0 %1671
    %1673 = vadd.xlane.f32.xlu0 %v1642
    %v1674 = vpop.xlane.xlu0 %1673
    %1675 = vadd.xlane.f32.xlu0 %v1644
    %v1676 = vpop.xlane.xlu0 %1675
    %1677 = vadd.xlane.f32.xlu0 %v1646
    %v1678 = vpop.xlane.xlu0 %1677
    %1679 = vadd.xlane.f32.xlu0 %v1648
    %v1680 = vpop.xlane.xlu0 %1679
    %1681 = vadd.xlane.f32.xlu0 %v1650
    %v1682 = vpop.xlane.xlu0 %1681
    %1683 = vadd.xlane.f32.xlu0 %v1652
    %v1684 = vpop.xlane.xlu0 %1683
    %1685 = vadd.xlane.f32.xlu0 %v1654
    %v1686 = vpop.xlane.xlu0 %1685
    %1687 = vadd.xlane.f32.xlu0 %v1656
    %v1688 = vpop.xlane.xlu0 %1687
    %1689 = vadd.xlane.f32.xlu0 %v1658
    %v1690 = vpop.xlane.xlu0 %1689
    %1691 = vadd.xlane.f32.xlu0 %v1660
    %v1692 = vpop.xlane.xlu0 %1691
    %1693 = vadd.xlane.f32.xlu0 %v1662
    %v1694 = vpop.xlane.xlu0 %1693
    %v1695 = vrcp.pop %v1664
    %v1696 = vrcp.pop %v1666
    %v1697 = vrcp.pop %v1668
    %v1698 = vrcp.pop %v1670
    %v1699 = vrcp.pop %v1672
    %v1700 = vrcp.pop %v1674
    %v1701 = vrcp.pop %v1676
    %v1702 = vrcp.pop %v1678
    %v1703 = vrcp.pop %v1680
    %v1704 = vrcp.pop %v1682
    %v1705 = vrcp.pop %v1684
    %v1706 = vrcp.pop %v1686
    %v1707 = vrcp.pop %v1688
    %v1708 = vrcp.pop %v1690
    %v1709 = vrcp.pop %v1692
    %v1710 = vrcp.pop %v1694
    %v1711 = vmul.f32 %v1632, %v1695
    %v1712 = vmul.f32 %v1634, %v1696
    %v1713 = vmul.f32 %v1636, %v1697
    %v1714 = vmul.f32 %v1638, %v1698
    %v1715 = vmul.f32 %v1640, %v1699
    %v1716 = vmul.f32 %v1642, %v1700
    %v1717 = vmul.f32 %v1644, %v1701
    %v1718 = vmul.f32 %v1646, %v1702
    %v1719 = vmul.f32 %v1648, %v1703
    %v1720 = vmul.f32 %v1650, %v1704
    %v1721 = vmul.f32 %v1652, %v1705
    %v1722 = vmul.f32 %v1654, %v1706
    %v1723 = vmul.f32 %v1656, %v1707
    %v1724 = vmul.f32 %v1658, %v1708
    %v1725 = vmul.f32 %v1660, %v1709
    %v1726 = vmul.f32 %v1662, %v1710
    %1727 = vrot.lane.b32.xlu0 %v1438, 112
    %v1728 = vpop.permute.xlu0 %1727
    %1729 = vrot.lane.b32.xlu0 %v1439, 112
    %v1730 = vpop.permute.xlu0 %1729
    %1731 = vrot.lane.b32.xlu0 %v1440, 112
    %v1732 = vpop.permute.xlu0 %1731
    %1733 = vrot.lane.b32.xlu0 %v1441, 112
    %v1734 = vpop.permute.xlu0 %1733
    %1735 = vrot.lane.b32.xlu0 %v1442, 112
    %v1736 = vpop.permute.xlu0 %1735
    %1737 = vrot.lane.b32.xlu0 %v1443, 112
    %v1738 = vpop.permute.xlu0 %1737
    %1739 = vrot.lane.b32.xlu0 %v1444, 112
    %v1740 = vpop.permute.xlu0 %1739
    %1741 = vrot.lane.b32.xlu0 %v1445, 112
    %v1742 = vpop.permute.xlu0 %1741
    %1743 = vrot.lane.b32.xlu0 %v1446, 112
    %v1744 = vpop.permute.xlu0 %1743
    %1745 = vrot.lane.b32.xlu0 %v1447, 112
    %v1746 = vpop.permute.xlu0 %1745
    %1747 = vrot.lane.b32.xlu0 %v1448, 112
    %v1748 = vpop.permute.xlu0 %1747
    %1749 = vrot.lane.b32.xlu0 %v1449, 112
    %v1750 = vpop.permute.xlu0 %1749
    %1751 = vrot.lane.b32.xlu0 %v1450, 112
    %v1752 = vpop.permute.xlu0 %1751
    %1753 = vrot.lane.b32.xlu0 %v1451, 112
    %v1754 = vpop.permute.xlu0 %1753
    %1755 = vrot.lane.b32.xlu0 %v1452, 112
    %v1756 = vpop.permute.xlu0 %1755
    %1757 = vrot.lane.b32.xlu0 %v1453, 112
    %v1758 = vpop.permute.xlu0 %1757
    %1775 = vmatpush.msra.mxu0 %v1758
    %1776 = vmatpush.msra.mxu0 %v1756
    %1777 = vmatpush.msra.mxu0 %v1754
    %1778 = vmatpush.msra.mxu0 %v1752
    %1779 = vmatpush.msra.mxu0 %v1750
    %1780 = vmatpush.msra.mxu0 %v1748
    %1781 = vmatpush.msra.mxu0 %v1746
    %1782 = vmatpush.msra.mxu0 %v1744
    %1783 = vmatpush.msra.mxu0 %v1742
    %1784 = vmatpush.msra.mxu0 %v1740
    %1785 = vmatpush.msra.mxu0 %v1738
    %1786 = vmatpush.msra.mxu0 %v1736
    %1787 = vmatpush.msra.mxu0 %v1734
    %1788 = vmatpush.msra.mxu0 %v1732
    %1789 = vmatpush.msra.mxu0 %v1730
    %1790 = vmatpush.msra.mxu0 %v1728
    %1791 = vmatmul.f32.gmra.mxu0 %v1711
    %v1792 = vpop.f32.mrf.mxu0
    %v1793 = vadd.f32 0.0, %v1792
    %1794 = vmatmul.f32.gmra.mxu0 %v1712
    %v1795 = vpop.f32.mrf.mxu0
    %v1796 = vadd.f32 0.0, %v1795
    %1797 = vmatmul.f32.gmra.mxu0 %v1713
    %v1798 = vpop.f32.mrf.mxu0
    %v1799 = vadd.f32 0.0, %v1798
    %1800 = vmatmul.f32.gmra.mxu0 %v1714
    %v1801 = vpop.f32.mrf.mxu0
    %v1802 = vadd.f32 0.0, %v1801
    %1803 = vmatmul.f32.gmra.mxu0 %v1715
    %v1804 = vpop.f32.mrf.mxu0
    %v1805 = vadd.f32 0.0, %v1804
    %1806 = vmatmul.f32.gmra.mxu0 %v1716
    %v1807 = vpop.f32.mrf.mxu0
    %v1808 = vadd.f32 0.0, %v1807
    %1809 = vmatmul.f32.gmra.mxu0 %v1717
    %v1810 = vpop.f32.mrf.mxu0
    %v1811 = vadd.f32 0.0, %v1810
    %1812 = vmatmul.f32.gmra.mxu0 %v1718
    %v1813 = vpop.f32.mrf.mxu0
    %v1814 = vadd.f32 0.0, %v1813
    %1815 = vmatmul.f32.gmra.mxu0 %v1719
    %v1816 = vpop.f32.mrf.mxu0
    %v1817 = vadd.f32 0.0, %v1816
    %1818 = vmatmul.f32.gmra.mxu0 %v1720
    %v1819 = vpop.f32.mrf.mxu0
    %v1820 = vadd.f32 0.0, %v1819
    %1821 = vmatmul.f32.gmra.mxu0 %v1721
    %v1822 = vpop.f32.mrf.mxu0
    %v1823 = vadd.f32 0.0, %v1822
    %1824 = vmatmul.f32.gmra.mxu0 %v1722
    %v1825 = vpop.f32.mrf.mxu0
    %v1826 = vadd.f32 0.0, %v1825
    %1827 = vmatmul.f32.gmra.mxu0 %v1723
    %v1828 = vpop.f32.mrf.mxu0
    %v1829 = vadd.f32 0.0, %v1828
    %1830 = vmatmul.f32.gmra.mxu0 %v1724
    %v1831 = vpop.f32.mrf.mxu0
    %v1832 = vadd.f32 0.0, %v1831
    %1833 = vmatmul.f32.gmra.mxu0 %v1725
    %v1834 = vpop.f32.mrf.mxu0
    %v1835 = vadd.f32 0.0, %v1834
    %1836 = vmatmul.f32.gmra.mxu0 %v1726
    %v1837 = vpop.f32.mrf.mxu0
    %v1838 = vadd.f32 0.0, %v1837
    %1839 = vdwg.mxu0
    %v1840 = vld [vmem:[#allocation3 + $0x1e0] sm:$0xff]
    %v1842 = vsel %vm391, %v1793, 0
    %v1845 = vsel %vm391, %v1796, 0
    %v1848 = vsel %vm391, %v1799, 0
    %v1851 = vsel %vm391, %v1802, 0
    %1853 = vmatpush.msra.mxu0 0.0
    %1854 = vmatpush.msra.mxu0 0.0
    %1855 = vmatpush.msra.mxu0 0.0
    %1856 = vmatpush.msra.mxu0 0.0
    %1857 = vmatpush.msra.mxu0 0.0
    %1858 = vmatpush.msra.mxu0 0.0
    %1859 = vmatpush.msra.mxu0 0.0
    %1860 = vmatpush.msra.mxu0 0.0
    %1861 = vmatpush.msra.mxu0 0.0
    %1862 = vmatpush.msra.mxu0 0.0
    %1863 = vmatpush.msra.mxu0 0.0
    %1864 = vmatpush.msra.mxu0 0.0
    %1865 = vmatpush.msra.mxu0 0.0
    %1866 = vmatpush.msra.mxu0 0.0
    %1867 = vmatpush.msra.mxu0 0.0
    %1868 = vmatpush.msra.mxu0 %v1840
    %1869 = vmatmul.f32.gmra.mxu0 %v1842
    %v1870 = vpop.f32.mrf.mxu0
    %v1871 = vadd.f32 0.0, %v1870
    %1872 = vmatmul.f32.gmra.mxu0 %v1845
    %v1873 = vpop.f32.mrf.mxu0
    %v1874 = vadd.f32 0.0, %v1873
    %1875 = vmatmul.f32.gmra.mxu0 %v1848
    %v1876 = vpop.f32.mrf.mxu0
    %v1877 = vadd.f32 0.0, %v1876
    %1878 = vmatmul.f32.gmra.mxu0 %v1851
    %v1879 = vpop.f32.mrf.mxu0
    %v1880 = vadd.f32 0.0, %v1879
    %1881 = vdwg.mxu0
    %v1882 = vperm.slane %v1168, 0
    %v1883 = vadd.f32 %v1882, %v1871
    %v1884 = vadd.f32 %v1882, %v1874
    %v1885 = vadd.f32 %v1882, %v1877
    %v1886 = vadd.f32 %v1882, %v1880
    %v1887 = vld [vmem:[#allocation3 + $0x1e8] sm:$0xff]
    %v1889 = vsel %vm391, %v1805, 0
    %v1892 = vsel %vm391, %v1808, 0
    %v1895 = vsel %vm391, %v1811, 0
    %v1898 = vsel %vm391, %v1814, 0
    %1900 = vmatpush.msra.mxu0 0.0
    %1901 = vmatpush.msra.mxu0 0.0
    %1902 = vmatpush.msra.mxu0 0.0
    %1903 = vmatpush.msra.mxu0 0.0
    %1904 = vmatpush.msra.mxu0 0.0
    %1905 = vmatpush.msra.mxu0 0.0
    %1906 = vmatpush.msra.mxu0 0.0
    %1907 = vmatpush.msra.mxu0 0.0
    %1908 = vmatpush.msra.mxu0 0.0
    %1909 = vmatpush.msra.mxu0 0.0
    %1910 = vmatpush.msra.mxu0 0.0
    %1911 = vmatpush.msra.mxu0 0.0
    %1912 = vmatpush.msra.mxu0 0.0
    %1913 = vmatpush.msra.mxu0 0.0
    %1914 = vmatpush.msra.mxu0 0.0
    %1915 = vmatpush.msra.mxu0 %v1887
    %1916 = vmatmul.f32.gmra.mxu0 %v1889
    %v1917 = vpop.f32.mrf.mxu0
    %v1918 = vadd.f32 0.0, %v1917
    %1919 = vmatmul.f32.gmra.mxu0 %v1892
    %v1920 = vpop.f32.mrf.mxu0
    %v1921 = vadd.f32 0.0, %v1920
    %1922 = vmatmul.f32.gmra.mxu0 %v1895
    %v1923 = vpop.f32.mrf.mxu0
    %v1924 = vadd.f32 0.0, %v1923
    %1925 = vmatmul.f32.gmra.mxu0 %v1898
    %v1926 = vpop.f32.mrf.mxu0
    %v1927 = vadd.f32 0.0, %v1926
    %1928 = vdwg.mxu0
    %v1929 = vadd.f32 %v1883, %v1918
    %v1930 = vadd.f32 %v1884, %v1921
    %v1931 = vadd.f32 %v1885, %v1924
    %v1932 = vadd.f32 %v1886, %v1927
    %v1933 = vld [vmem:[#allocation3 + $0x1f0] sm:$0xff]
    %v1935 = vsel %vm391, %v1817, 0
    %v1938 = vsel %vm391, %v1820, 0
    %v1941 = vsel %vm391, %v1823, 0
    %v1944 = vsel %vm391, %v1826, 0
    %1946 = vmatpush.msra.mxu0 0.0
    %1947 = vmatpush.msra.mxu0 0.0
    %1948 = vmatpush.msra.mxu0 0.0
    %1949 = vmatpush.msra.mxu0 0.0
    %1950 = vmatpush.msra.mxu0 0.0
    %1951 = vmatpush.msra.mxu0 0.0
    %1952 = vmatpush.msra.mxu0 0.0
    %1953 = vmatpush.msra.mxu0 0.0
    %1954 = vmatpush.msra.mxu0 0.0
    %1955 = vmatpush.msra.mxu0 0.0
    %1956 = vmatpush.msra.mxu0 0.0
    %1957 = vmatpush.msra.mxu0 0.0
    %1958 = vmatpush.msra.mxu0 0.0
    %1959 = vmatpush.msra.mxu0 0.0
    %1960 = vmatpush.msra.mxu0 0.0
    %1961 = vmatpush.msra.mxu0 %v1933
    %1962 = vmatmul.f32.gmra.mxu0 %v1935
    %v1963 = vpop.f32.mrf.mxu0
    %v1964 = vadd.f32 0.0, %v1963
    %1965 = vmatmul.f32.gmra.mxu0 %v1938
    %v1966 = vpop.f32.mrf.mxu0
    %v1967 = vadd.f32 0.0, %v1966
    %1968 = vmatmul.f32.gmra.mxu0 %v1941
    %v1969 = vpop.f32.mrf.mxu0
    %v1970 = vadd.f32 0.0, %v1969
    %1971 = vmatmul.f32.gmra.mxu0 %v1944
    %v1972 = vpop.f32.mrf.mxu0
    %v1973 = vadd.f32 0.0, %v1972
    %1974 = vdwg.mxu0
    %v1975 = vadd.f32 %v1929, %v1964
    %v1976 = vadd.f32 %v1930, %v1967
    %v1977 = vadd.f32 %v1931, %v1970
    %v1978 = vadd.f32 %v1932, %v1973
    %v1979 = vld [vmem:[#allocation3 + $0x1f8] sm:$0xff]
    %v1981 = vsel %vm391, %v1829, 0
    %v1984 = vsel %vm391, %v1832, 0
    %v1987 = vsel %vm391, %v1835, 0
    %v1990 = vsel %vm391, %v1838, 0
    %1992 = vmatpush.msra.mxu0 0.0
    %1993 = vmatpush.msra.mxu0 0.0
    %1994 = vmatpush.msra.mxu0 0.0
    %1995 = vmatpush.msra.mxu0 0.0
    %1996 = vmatpush.msra.mxu0 0.0
    %1997 = vmatpush.msra.mxu0 0.0
    %1998 = vmatpush.msra.mxu0 0.0
    %1999 = vmatpush.msra.mxu0 0.0
    %2000 = vmatpush.msra.mxu0 0.0
    %2001 = vmatpush.msra.mxu0 0.0
    %2002 = vmatpush.msra.mxu0 0.0
    %2003 = vmatpush.msra.mxu0 0.0
    %2004 = vmatpush.msra.mxu0 0.0
    %2005 = vmatpush.msra.mxu0 0.0
    %2006 = vmatpush.msra.mxu0 0.0
    %2007 = vmatpush.msra.mxu0 %v1979
    %2008 = vmatmul.f32.gmra.mxu0 %v1981
    %v2009 = vpop.f32.mrf.mxu0
    %v2010 = vadd.f32 0.0, %v2009
    %2011 = vmatmul.f32.gmra.mxu0 %v1984
    %v2012 = vpop.f32.mrf.mxu0
    %v2013 = vadd.f32 0.0, %v2012
    %2014 = vmatmul.f32.gmra.mxu0 %v1987
    %v2015 = vpop.f32.mrf.mxu0
    %v2016 = vadd.f32 0.0, %v2015
    %2017 = vmatmul.f32.gmra.mxu0 %v1990
    %v2018 = vpop.f32.mrf.mxu0
    %v2019 = vadd.f32 0.0, %v2018
    %2020 = vdwg.mxu0
    %v2021 = vadd.f32 %v1975, %v2010
    %v2022 = vadd.f32 %v1976, %v2013
    %v2023 = vadd.f32 %v1977, %v2016
    %v2024 = vadd.f32 %v1978, %v2019
    %v2025 = vadd.f32 %v1163, %v2021
    %v2026 = vadd.f32 %v1164, %v2022
    %v2027 = vadd.f32 %v1165, %v2023
    %v2028 = vadd.f32 %v1166, %v2024
    %v2029 = vld [vmem:[#allocation3 + $0x200] sm:$0xff]
    %v2030 = vld [vmem:[#allocation3 + $0x208] sm:$0xff]
    %v2031 = vld [vmem:[#allocation3 + $0x210] sm:$0xff]
    %v2032 = vld [vmem:[#allocation3 + $0x218] sm:$0xff]
    %v2033 = vld [vmem:[#allocation3 + $0x220] sm:$0xff]
    %v2034 = vld [vmem:[#allocation3 + $0x228] sm:$0xff]
    %v2035 = vld [vmem:[#allocation3 + $0x230] sm:$0xff]
    %v2036 = vld [vmem:[#allocation3 + $0x238] sm:$0xff]
    %v2037 = vld [vmem:[#allocation3 + $0x240] sm:$0xff]
    %v2038 = vld [vmem:[#allocation3 + $0x248] sm:$0xff]
    %v2039 = vld [vmem:[#allocation3 + $0x250] sm:$0xff]
    %v2040 = vld [vmem:[#allocation3 + $0x258] sm:$0xff]
    %v2041 = vsel %vm49, %v2025, 0.0
    %2042 = vadd.xlane.f32.xlu0 %v2041
    %v2043 = vpop.xlane.xlu0 %2042
    %v2044 = vsel %vm49, %v2026, 0.0
    %2045 = vadd.xlane.f32.xlu0 %v2044
    %v2046 = vpop.xlane.xlu0 %2045
    %v2047 = vsel %vm49, %v2027, 0.0
    %2048 = vadd.xlane.f32.xlu0 %v2047
    %v2049 = vpop.xlane.xlu0 %2048
    %v2050 = vsel %vm49, %v2028, 0.0
    %2051 = vadd.xlane.f32.xlu0 %v2050
    %v2052 = vpop.xlane.xlu0 %2051
    %v2053 = vmul.f32 %v2043, %v68
    %v2054 = vmul.f32 %v2046, %v68
    %v2055 = vmul.f32 %v2049, %v68
    %v2056 = vmul.f32 %v2052, %v68
    %v2057 = vsub.f32 %v2025, %v2053
    %v2058 = vsub.f32 %v2026, %v2054
    %v2059 = vsub.f32 %v2027, %v2055
    %v2060 = vsub.f32 %v2028, %v2056
    %v2061 = vmul.f32 %v2057, %v2057
    %v2062 = vmul.f32 %v2058, %v2058
    %v2063 = vmul.f32 %v2059, %v2059
    %v2064 = vmul.f32 %v2060, %v2060
    %v2065 = vsel %vm49, %v2061, 0.0
    %2066 = vadd.xlane.f32.xlu0 %v2065
    %v2067 = vpop.xlane.xlu0 %2066
    %v2068 = vsel %vm49, %v2062, 0.0
    %2069 = vadd.xlane.f32.xlu0 %v2068
    %v2070 = vpop.xlane.xlu0 %2069
    %v2071 = vsel %vm49, %v2063, 0.0
    %2072 = vadd.xlane.f32.xlu0 %v2071
    %v2073 = vpop.xlane.xlu0 %2072
    %v2074 = vsel %vm49, %v2064, 0.0
    %2075 = vadd.xlane.f32.xlu0 %v2074
    %v2076 = vpop.xlane.xlu0 %2075
    %v2077 = vmul.f32 %v2067, %v68
    %v2078 = vmul.f32 %v2070, %v68
    %v2079 = vmul.f32 %v2073, %v68
    %v2080 = vmul.f32 %v2076, %v68
    %v2081 = vadd.f32 %v2077, 1e-12
    %v2082 = vadd.f32 %v2078, 1e-12
    %v2083 = vadd.f32 %v2079, 1e-12
    %v2084 = vadd.f32 %v2080, 1e-12
    %v2085 = vrsqrt.pop %v2081
    %v2086 = vmul.f32 %v2085, %v2081
    %v2087 = vmul.f32 %v2086, %v2085
    %v2088 = vmul.f32 0.5, %v2087
    %v2089 = vsub.f32 1.5, %v2088
    %v2090 = vmul.f32 %v2085, %v2089
    %vm2091 = vweird.f32 %v2081
    %vm2092 = vweird.f32 %v2085
    %vm2093 = vmor %vm2091, %vm2092
    %v2094 = vsel %vm2093, %v2085, %v2090
    %v2095 = vrsqrt.pop %v2082
    %v2096 = vmul.f32 %v2095, %v2082
    %v2097 = vmul.f32 %v2096, %v2095
    %v2098 = vmul.f32 0.5, %v2097
    %v2099 = vsub.f32 1.5, %v2098
    %v2100 = vmul.f32 %v2095, %v2099
    %vm2101 = vweird.f32 %v2082
    %vm2102 = vweird.f32 %v2095
    %vm2103 = vmor %vm2101, %vm2102
    %v2104 = vsel %vm2103, %v2095, %v2100
    %v2105 = vrsqrt.pop %v2083
    %v2106 = vmul.f32 %v2105, %v2083
    %v2107 = vmul.f32 %v2106, %v2105
    %v2108 = vmul.f32 0.5, %v2107
    %v2109 = vsub.f32 1.5, %v2108
    %v2110 = vmul.f32 %v2105, %v2109
    %vm2111 = vweird.f32 %v2083
    %vm2112 = vweird.f32 %v2105
    %vm2113 = vmor %vm2111, %vm2112
    %v2114 = vsel %vm2113, %v2105, %v2110
    %v2115 = vrsqrt.pop %v2084
    %v2116 = vmul.f32 %v2115, %v2084
    %v2117 = vmul.f32 %v2116, %v2115
    %v2118 = vmul.f32 0.5, %v2117
    %v2119 = vsub.f32 1.5, %v2118
    %v2120 = vmul.f32 %v2115, %v2119
    %vm2121 = vweird.f32 %v2084
    %vm2122 = vweird.f32 %v2115
    %vm2123 = vmor %vm2121, %vm2122
    %v2124 = vsel %vm2123, %v2115, %v2120
    %v2125 = vmul.f32 %v2057, %v2094
    %v2126 = vmul.f32 %v2058, %v2104
    %v2127 = vmul.f32 %v2059, %v2114
    %v2128 = vmul.f32 %v2060, %v2124
    %2129 = vrot.lane.b32.xlu0 %v1257, 64
    %v2130 = vpop.permute.xlu0 %2129
    %v2132 = vmul.f32 %v2125, %v2130
    %v2133 = vmul.f32 %v2126, %v2130
    %v2134 = vmul.f32 %v2127, %v2130
    %v2135 = vmul.f32 %v2128, %v2130
    %2136 = vrot.lane.b32.xlu0 %v1257, 32
    %v2137 = vpop.permute.xlu0 %2136
    %v2139 = vadd.f32 %v2132, %v2137
    %v2140 = vadd.f32 %v2133, %v2137
    %v2141 = vadd.f32 %v2134, %v2137
    %v2142 = vadd.f32 %v2135, %v2137
    %2144 = vrot.lane.b32.xlu0 %v1882, 64
    %v2145 = vpop.permute.xlu0 %2144
    %v2148 = vsel %vm49, %v2139, 0
    %v2151 = vsel %vm49, %v2140, 0
    %v2154 = vsel %vm49, %v2141, 0
    %v2157 = vsel %vm49, %v2142, 0
    %2159 = vmatpush.msra.mxu0 0.0
    %2160 = vmatpush.msra.mxu0 0.0
    %2161 = vmatpush.msra.mxu0 0.0
    %2162 = vmatpush.msra.mxu0 0.0
    %2163 = vmatpush.msra.mxu0 0.0
    %2164 = vmatpush.msra.mxu0 0.0
    %2165 = vmatpush.msra.mxu0 0.0
    %2166 = vmatpush.msra.mxu0 0.0
    %2167 = vmatpush.msra.mxu0 0.0
    %2168 = vmatpush.msra.mxu0 0.0
    %2169 = vmatpush.msra.mxu0 0.0
    %2170 = vmatpush.msra.mxu0 0.0
    %2171 = vmatpush.msra.mxu0 %v2032
    %2172 = vmatpush.msra.mxu0 %v2031
    %2173 = vmatpush.msra.mxu0 %v2030
    %2174 = vmatpush.msra.mxu0 %v2029
    %2175 = vmatmul.f32.gmra.mxu0 %v2148
    %v2176 = vpop.f32.mrf.mxu0
    %v2177 = vadd.f32 %v2145, %v2176
    %2178 = vmatmul.f32.gmra.mxu0 %v2151
    %v2179 = vpop.f32.mrf.mxu0
    %v2180 = vadd.f32 %v2145, %v2179
    %2181 = vmatmul.f32.gmra.mxu0 %v2154
    %v2182 = vpop.f32.mrf.mxu0
    %v2183 = vadd.f32 %v2145, %v2182
    %2184 = vmatmul.f32.gmra.mxu0 %v2157
    %v2185 = vpop.f32.mrf.mxu0
    %v2186 = vadd.f32 %v2145, %v2185
    %2187 = vdwg.mxu0
    %v2188 = vmul.f32 %v2177, 0.5
    %v2189 = vmul.f32 %v2180, 0.5
    %v2190 = vmul.f32 %v2183, 0.5
    %v2191 = vmul.f32 %v2186, 0.5
    %v2192 = vmul.f32 %v2177, 0.044715
    %v2193 = vmul.f32 %v2180, 0.044715
    %v2194 = vmul.f32 %v2183, 0.044715
    %v2195 = vmul.f32 %v2186, 0.044715
    %v2196 = vmul.f32 %v2192, %v2177
    %v2197 = vmul.f32 %v2193, %v2180
    %v2198 = vmul.f32 %v2194, %v2183
    %v2199 = vmul.f32 %v2195, %v2186
    %v2200 = vmul.f32 %v2196, %v2177
    %v2201 = vmul.f32 %v2197, %v2180
    %v2202 = vmul.f32 %v2198, %v2183
    %v2203 = vmul.f32 %v2199, %v2186
    %v2204 = vadd.f32 %v2177, %v2200
    %v2205 = vadd.f32 %v2180, %v2201
    %v2206 = vadd.f32 %v2183, %v2202
    %v2207 = vadd.f32 %v2186, %v2203
    %v2208 = vmul.f32 %v2204, 0.7978846
    %v2209 = vmul.f32 %v2205, 0.7978846
    %v2210 = vmul.f32 %v2206, 0.7978846
    %v2211 = vmul.f32 %v2207, 0.7978846
    %v2212 = vtanh.pop %v2208
    %v2213 = vtanh.pop %v2209
    %v2214 = vtanh.pop %v2210
    %v2215 = vtanh.pop %v2211
    %v2216 = vadd.f32 %v2212, 1.0
    %v2217 = vadd.f32 %v2213, 1.0
    %v2218 = vadd.f32 %v2214, 1.0
    %v2219 = vadd.f32 %v2215, 1.0
    %v2220 = vmul.f32 %v2188, %v2216
    %v2221 = vmul.f32 %v2189, %v2217
    %v2222 = vmul.f32 %v2190, %v2218
    %v2223 = vmul.f32 %v2191, %v2219
    %v2225 = vsel %vm1114, %v2220, 0
    %v2228 = vsel %vm1114, %v2221, 0
    %v2231 = vsel %vm1114, %v2222, 0
    %v2234 = vsel %vm1114, %v2223, 0
    %2236 = vmatpush.msra.mxu0 0.0
    %2237 = vmatpush.msra.mxu0 0.0
    %2238 = vmatpush.msra.mxu0 0.0
    %2239 = vmatpush.msra.mxu0 0.0
    %2240 = vmatpush.msra.mxu0 0.0
    %2241 = vmatpush.msra.mxu0 0.0
    %2242 = vmatpush.msra.mxu0 0.0
    %2243 = vmatpush.msra.mxu0 0.0
    %2244 = vmatpush.msra.mxu0 %v2040
    %2245 = vmatpush.msra.mxu0 %v2039
    %2246 = vmatpush.msra.mxu0 %v2038
    %2247 = vmatpush.msra.mxu0 %v2037
    %2248 = vmatpush.msra.mxu0 %v2036
    %2249 = vmatpush.msra.mxu0 %v2035
    %2250 = vmatpush.msra.mxu0 %v2034
    %2251 = vmatpush.msra.mxu0 %v2033
    %2252 = vmatmul.f32.gmra.mxu0 %v2225
    %v2253 = vpop.f32.mrf.mxu0
    %v2254 = vadd.f32 0.0, %v2253
    %2255 = vmatmul.f32.gmra.mxu0 %v2228
    %v2256 = vpop.f32.mrf.mxu0
    %v2257 = vadd.f32 0.0, %v2256
    %2258 = vmatmul.f32.gmra.mxu0 %v2231
    %v2259 = vpop.f32.mrf.mxu0
    %v2260 = vadd.f32 0.0, %v2259
    %2261 = vmatmul.f32.gmra.mxu0 %v2234
    %v2262 = vpop.f32.mrf.mxu0
    %v2263 = vadd.f32 0.0, %v2262
    %2264 = vdwg.mxu0
    %v2265 = vadd.f32 %v2025, %v2254
    %v2266 = vadd.f32 %v2026, %v2257
    %v2267 = vadd.f32 %v2027, %v2260
    %v2268 = vadd.f32 %v2028, %v2263
    %2269 = vrot.lane.b32.xlu0 %v1882, 96
    %v2270 = vpop.permute.xlu0 %2269
    %v2272 = vadd.f32 %v2265, %v2270
    %v2273 = vadd.f32 %v2266, %v2270
    %v2274 = vadd.f32 %v2267, %v2270
    %v2275 = vadd.f32 %v2268, %v2270
    %v2276 = vld [vmem:[#allocation3 + $0x260] sm:$0x1]
    %v2277 = vld [vmem:[#allocation3 + $0x268] sm:$0x1]
    %v2278 = vld [vmem:[#allocation3 + $0x270] sm:$0xff]
    %v2279 = vld [vmem:[#allocation3 + $0x278] sm:$0xff]
    %v2280 = vld [vmem:[#allocation3 + $0x280] sm:$0xff]
    %v2281 = vld [vmem:[#allocation3 + $0x288] sm:$0xff]
    %v2282 = vld [vmem:[#allocation3 + $0x290] sm:$0xff]
    %v2284 = vsel %vm49, %v2278, 0
    %2286 = vmatpush.msra.mxu0 0.0
    %2287 = vmatpush.msra.mxu0 0.0
    %2288 = vmatpush.msra.mxu0 0.0
    %2289 = vmatpush.msra.mxu0 0.0
    %2290 = vmatpush.msra.mxu0 0.0
    %2291 = vmatpush.msra.mxu0 0.0
    %2292 = vmatpush.msra.mxu0 0.0
    %2293 = vmatpush.msra.mxu0 0.0
    %2294 = vmatpush.msra.mxu0 0.0
    %2295 = vmatpush.msra.mxu0 0.0
    %2296 = vmatpush.msra.mxu0 0.0
    %2297 = vmatpush.msra.mxu0 0.0
    %2298 = vmatpush.msra.mxu0 %v2275
    %2299 = vmatpush.msra.mxu0 %v2274
    %2300 = vmatpush.msra.mxu0 %v2273
    %2301 = vmatpush.msra.mxu0 %v2272
    %2302 = vmatmul.f32.gmra.mxu0 %v2284
    %v2303 = vpop.f32.mrf.mxu0
    %v2304 = vadd.f32 0.0, %v2303
    %2305 = vdwg.mxu0
    %v2306 = vsel %vm49, %v2304, 0.0
    %2307 = vadd.xlane.f32.xlu0 %v2306
    %v2308 = vpop.xlane.xlu0 %2307
    %v2309 = vmul.f32 %v2308, %v68
    %v2310 = vsub.f32 %v2304, %v2309
    %v2311 = vmul.f32 %v2310, %v2310
    %v2312 = vsel %vm49, %v2311, 0.0
    %2313 = vadd.xlane.f32.xlu0 %v2312
    %v2314 = vpop.xlane.xlu0 %2313
    %v2315 = vmul.f32 %v2314, %v68
    %v2316 = vadd.f32 %v2315, 1e-05
    %v2317 = vrsqrt.pop %v2316
    %v2318 = vmul.f32 %v2317, %v2316
    %v2319 = vmul.f32 %v2318, %v2317
    %v2320 = vmul.f32 0.5, %v2319
    %v2321 = vsub.f32 1.5, %v2320
    %v2322 = vmul.f32 %v2317, %v2321
    %vm2323 = vweird.f32 %v2316
    %vm2324 = vweird.f32 %v2317
    %vm2325 = vmor %vm2323, %vm2324
    %v2326 = vsel %vm2325, %v2317, %v2322
    %v2327 = vmul.f32 %v2310, %v2326
    %v2328 = vperm.slane %v2276, 0
    %v2329 = vmul.f32 %v2327, %v2328
    %2331 = vrot.lane.b32.xlu0 %v2328, 96
    %v2332 = vpop.permute.xlu0 %2331
    %v2334 = vadd.f32 %v2329, %v2332
    %v2335 = vperm.slane %v2277, 0
    %v2337 = vsel %vm49, %v2334, 0
    %2339 = vmatpush.msra.mxu0 0.0
    %2340 = vmatpush.msra.mxu0 0.0
    %2341 = vmatpush.msra.mxu0 0.0
    %2342 = vmatpush.msra.mxu0 0.0
    %2343 = vmatpush.msra.mxu0 0.0
    %2344 = vmatpush.msra.mxu0 0.0
    %2345 = vmatpush.msra.mxu0 0.0
    %2346 = vmatpush.msra.mxu0 0.0
    %2347 = vmatpush.msra.mxu0 0.0
    %2348 = vmatpush.msra.mxu0 0.0
    %2349 = vmatpush.msra.mxu0 0.0
    %2350 = vmatpush.msra.mxu0 0.0
    %2351 = vmatpush.msra.mxu0 %v2282
    %2352 = vmatpush.msra.mxu0 %v2281
    %2353 = vmatpush.msra.mxu0 %v2280
    %2354 = vmatpush.msra.mxu0 %v2279
    %2355 = vmatmul.f32.gmra.mxu0 %v2337
    %v2356 = vpop.f32.mrf.mxu0
    %v2357 = vadd.f32 %v2335, %v2356
    %2358 = vdwg.mxu0
    %2359 = vst [vmem:[%s2] sm:$0xff] %v2357
    // Predicated region
    $region14: #{vit_forward.1} parent=1 // pred_check
      _
    $region15: #{vit_forward.1} parent=1 // pred_check_branch
      %2361 = sbr.rel (0) target = $region17
    $region16: #{vit_forward.1} parent=1 // pred_region
      _
    $region17: #{vit_forward.1} parent=1 // pred_fallthru
      _
    // Predicated region
    $region18: #{vit_forward.1} parent=1 // pred_check
      _
    $region19: #{vit_forward.1} parent=1 // pred_check_branch
      %2363 = sbr.rel (0) target = $region21
    $region20: #{vit_forward.1} parent=1 // pred_region
      _
    $region21: #{vit_forward.1} parent=1 // pred_fallthru
      _
    %2364 = vsyncpa [#allocation4], 1

</llo_original>
